<compile_context>
chip_gen: v6e
topology: v6e:2x2x1
jax: 0.10.0
libtpu: 0.0.40
codegen_flags: <defaults>
</compile_context>

<pallas_src>
import jax
import jax.numpy as jnp
from jax.experimental import pallas as pl
from jax.experimental.pallas import tpu as pltpu

KSIZE = 7
PAD = 3  # padding = 3 for kernel_size = 7


def _spatial_attention_kernel(x_ref, w_ref, o_ref, sum_ref, max_ref):
    # x_ref  : (C_TILE, H, W)  VMEM input tile (batch squeezed, channels tiled)
    # w_ref  : (2*K*K,)        SMEM conv weight, layout [in_c, kh, kw]; the 1/C
    #                          mean scale is pre-folded into the in_c==0 taps.
    # o_ref  : (H, W)          VMEM output tile (batch / out-channel squeezed)
    # sum_ref, max_ref : (H, W) f32 VMEM scratch, persist across the C axis.
    c_tile, H, W = x_ref.shape
    FH = ((H + 2 * PAD + 7) // 8) * 8      # sublane-aligned, >= H + 6 (cheap)
    FW = ((W + 127) // 128) * 128          # lane-aligned, NOT widened further
    guard = FW - W                         # zero guard columns on the right
    k_idx = pl.program_id(1)
    n_k = pl.num_programs(1)

    # ---- streaming channel reduction over this channel tile ----------------
    x0 = x_ref[0].astype(jnp.float32)
    if c_tile > 1:
        def body(i, carry):
            s, m = carry
            xi = x_ref[i].astype(jnp.float32)     # per-channel cast, no copy
            return s + xi, jnp.maximum(m, xi)
        tile_sum, tile_max = jax.lax.fori_loop(
            1, c_tile, body, (x0, x0), unroll=min(8, c_tile - 1))
    else:
        tile_sum, tile_max = x0, x0

    @pl.when(k_idx == 0)
    def _init():
        sum_ref[...] = tile_sum
        max_ref[...] = tile_max

    @pl.when(k_idx > 0)
    def _accum():
        sum_ref[...] = sum_ref[...] + tile_sum
        max_ref[...] = jnp.maximum(max_ref[...], tile_max)

    # ---- finalize on the last channel tile: 7x7 conv + sigmoid -------------
    @pl.when(k_idx == n_k - 1)
    def _finalize():
        # Embed each reduced feature in a zero frame (FH, FW).  Row wrap of the
        # rolls always lands in the zero rows (FH >= H+6); column wrap is
        # handled by the guard columns or by a static lane mask per tap.
        def make_frame(feat):
            if FW > W:
                feat = jnp.concatenate(
                    [feat, jnp.zeros((H, FW - W), jnp.float32)], axis=1)
            return jnp.concatenate(
                [feat, jnp.zeros((FH - H, FW), jnp.float32)], axis=0)

        frames = (make_frame(sum_ref[...]), make_frame(max_ref[...]))

        # Independent MAC chains break the add dependence (no f32 FMA on
        # v5e/v6e); fall back to 2 chains for big slabs to avoid vreg spills.
        n_chains = 4 if H * FW <= 4096 else 2
        need_mask = guard < PAD
        col = (jax.lax.broadcasted_iota(jnp.int32, (H, FW), 1)
               if need_mask else None)

        parts = [None] * n_chains
        for ci in range(2):
            frame = frames[ci]
            for dh in range(KSIZE):
                rshift = (PAD - dh) % FH
                rows = pltpu.roll(frame, rshift, axis=0) if rshift else frame
                slab = rows[:H, :]                       # aligned row prefix
                chain = (2 * ci + (dh & 1)) % n_chains
                for dw in range(KSIZE):
                    p = PAD - dw
                    lshift = p % FW
                    shifted = (pltpu.roll(slab, lshift, axis=1)
                               if lshift else slab)
                    # Zero the wrapped lanes only when the guard columns are
                    # too few (static decision; columns masked are exactly the
                    # ones whose correct padded contribution is zero).
                    if p > 0 and guard < p:
                        shifted = jnp.where(col >= p, shifted, 0.0)
                    elif p < 0 and guard < -p:
                        shifted = jnp.where(col < FW + p, shifted, 0.0)
                    wval = w_ref[ci * KSIZE * KSIZE + dh * KSIZE + dw]  # SMEM
                    term = wval * shifted
                    parts[chain] = (term if parts[chain] is None
                                    else parts[chain] + term)

        if n_chains == 4:
            acc = (parts[0] + parts[1]) + (parts[2] + parts[3])
        else:
            acc = parts[0] + parts[1]

        o_ref[...] = jax.nn.sigmoid(acc[:, :W]).astype(o_ref.dtype)


def _pick_c_tile(C, H, W, itemsize, budget_bytes=8 << 20):
    """Largest divisor of C whose double-buffered (C_TILE,H,W) block fits."""
    fh = ((H + 7) // 8) * 8
    fw = ((W + 127) // 128) * 128
    per_chan = fh * fw * itemsize
    cap = max(1, int(budget_bytes // (2 * per_chan)))
    c_tile = max(1, min(C, cap, 64))
    while C % c_tile:
        c_tile -= 1
    return c_tile


def spatial_attention(x, weight):
    """x: (N, C, H, W); weight: (1, 2, K, K) -> (N, 1, H, W)."""
    N, C, H, W = x.shape
    assert weight.shape == (1, 2, KSIZE, KSIZE)

    # Fold the 1/C of the channel mean into the avg-branch (in-channel 0) taps
    # so the kernel accumulates a plain sum.
    w = weight.astype(jnp.float32)
    w = w.at[:, 0].multiply(1.0 / C)
    w_flat = w.reshape(-1)                       # (2*K*K,), SMEM-bound

    itemsize = jnp.dtype(x.dtype).itemsize
    c_tile = _pick_c_tile(C, H, W, itemsize)
    n_c = C // c_tile

    fh_pad = ((H + 7) // 8) * 8
    fw_pad = ((W + 127) // 128) * 128
    est = (2 * c_tile * fh_pad * fw_pad * itemsize   # double-buffered input
           + 2 * fh_pad * fw_pad * 4                 # sum/max scratch
           + 2 * fh_pad * fw_pad * itemsize)         # output block
    vmem_limit = int(min(64 << 20, max(32 << 20, 4 * est)))

    return pl.pallas_call(
        _spatial_attention_kernel,
        out_shape=jax.ShapeDtypeStruct((N, 1, H, W), x.dtype),
        grid_spec=pltpu.PrefetchScalarGridSpec(
            num_scalar_prefetch=0,
            grid=(N, n_c),                           # reduction axis (C) last
            in_specs=[
                pl.BlockSpec((None, c_tile, H, W), lambda n, k: (n, k, 0, 0)),
                pl.BlockSpec(memory_space=pltpu.SMEM),   # conv weight scalars
            ],
            out_specs=pl.BlockSpec((None, None, H, W),
                                   lambda n, k: (n, 0, 0, 0)),
            scratch_shapes=[
                pltpu.VMEM((H, W), jnp.float32),     # running channel sum
                pltpu.VMEM((H, W), jnp.float32),     # running channel max
            ],
        ),
        compiler_params=pltpu.CompilerParams(
            dimension_semantics=("parallel", "arbitrary"),
            vmem_limit_bytes=vmem_limit),
    )(x, w_flat)


def spatial_attention_ref(x, weight):
    """Pure-JAX reference matching the PyTorch module."""
    avg = jnp.mean(x, axis=1, keepdims=True)
    mx = jnp.max(x, axis=1, keepdims=True)
    feat = jnp.concatenate([avg, mx], axis=1)        # (N, 2, H, W)
    y = jax.lax.conv_general_dilated(
        feat, weight, window_strides=(1, 1),
        padding=[(PAD, PAD), (PAD, PAD)],
        dimension_numbers=("NCHW", "OIHW", "NCHW"))
    return jax.nn.sigmoid(y)


if __name__ == "__main__":
    key = jax.random.PRNGKey(0)
    kx, kw = jax.random.split(key)

    N, C, H, W = 2, 4, 16, 16
    x = jax.random.normal(kx, (N, C, H, W), dtype=jnp.float32)

    # Deterministic Conv2d(2, 1, 7, bias=False) weight, kaiming-uniform-like.
    fan_in = 2 * KSIZE * KSIZE
    bound = 1.0 / jnp.sqrt(fan_in)
    weight = jax.random.uniform(
        kw, (1, 2, KSIZE, KSIZE), minval=-bound, maxval=bound,
        dtype=jnp.float32)

    out = spatial_attention(x, weight)
    out = jax.block_until_ready(out)

    ref = spatial_attention_ref(x, weight)
    assert out.shape == (N, 1, H, W)
    assert jnp.allclose(out, ref, atol=1e-5, rtol=1e-5)

    print("KERNEL_OK")
</pallas_src>

<mosaic_0001>
module attributes {stable_mosaic.version = 11 : i64} {
  func.func @_spatial_attention_kernel(%arg0: i32, %arg1: i32, %arg2: memref<1x4x16x16xf32, #tpu.memory_space<vmem>>, %arg3: memref<98xf32, #tpu.memory_space<smem>>, %arg4: memref<1x1x16x16xf32, #tpu.memory_space<vmem>>, %arg5: memref<16x16xf32, #tpu.memory_space<vmem>>, %arg6: memref<16x16xf32, #tpu.memory_space<vmem>>) attributes {dimension_semantics = [#tpu.dimension_semantics<parallel>, #tpu.dimension_semantics<arbitrary>], iteration_bounds = array<i64: 2, 1>, scalar_prefetch = 0 : i64, scratch_operands = 2 : i64, tpu.core_type = #tpu.core_type<tc>, window_params = [{transform_indices = @transform_0, window_bounds = array<i64: 1, 4, 16, 16>}, {transform_indices = @transform_1, window_bounds = array<i64: 98>}, {transform_indices = @transform_2, window_bounds = array<i64: 1, 1, 16, 16>}]} {
    %c0 = arith.constant 0 : index
    %c0_0 = arith.constant 0 : index
    %c0_1 = arith.constant 0 : index
    %c0_2 = arith.constant 0 : index
    %0 = vector.load %arg2[%c0, %c0_0, %c0_1, %c0_2] : memref<1x4x16x16xf32, #tpu.memory_space<vmem>>, vector<1x1x16x16xf32>
    %1 = vector.shape_cast %0 : vector<1x1x16x16xf32> to vector<16x16xf32>
    %c1_i32 = arith.constant 1 : i32
    %c0_3 = arith.constant 0 : index
    %2 = arith.index_cast %c1_i32 : i32 to index
    %c0_4 = arith.constant 0 : index
    %c0_5 = arith.constant 0 : index
    %3 = vector.load %arg2[%c0_3, %2, %c0_4, %c0_5] : memref<1x4x16x16xf32, #tpu.memory_space<vmem>>, vector<1x1x16x16xf32>
    %4 = vector.shape_cast %3 : vector<1x1x16x16xf32> to vector<16x16xf32>
    %5 = arith.addf %1, %4 : vector<16x16xf32>
    %6 = arith.maximumf %1, %4 : vector<16x16xf32>
    %c2_i32 = arith.constant 2 : i32
    %c0_6 = arith.constant 0 : index
    %7 = arith.index_cast %c2_i32 : i32 to index
    %c0_7 = arith.constant 0 : index
    %c0_8 = arith.constant 0 : index
    %8 = vector.load %arg2[%c0_6, %7, %c0_7, %c0_8] : memref<1x4x16x16xf32, #tpu.memory_space<vmem>>, vector<1x1x16x16xf32>
    %9 = vector.shape_cast %8 : vector<1x1x16x16xf32> to vector<16x16xf32>
    %10 = arith.addf %5, %9 : vector<16x16xf32>
    %11 = arith.maximumf %6, %9 : vector<16x16xf32>
    %c3_i32 = arith.constant 3 : i32
    %c0_9 = arith.constant 0 : index
    %12 = arith.index_cast %c3_i32 : i32 to index
    %c0_10 = arith.constant 0 : index
    %c0_11 = arith.constant 0 : index
    %13 = vector.load %arg2[%c0_9, %12, %c0_10, %c0_11] : memref<1x4x16x16xf32, #tpu.memory_space<vmem>>, vector<1x1x16x16xf32>
    %14 = vector.shape_cast %13 : vector<1x1x16x16xf32> to vector<16x16xf32>
    %15 = arith.addf %10, %14 : vector<16x16xf32>
    %16 = arith.maximumf %11, %14 : vector<16x16xf32>
    %c3_i32_12 = arith.constant 3 : i32
    %c0_i32 = arith.constant 0 : i32
    %17 = arith.cmpi eq, %arg1, %c0_i32 : i32
    %18 = arith.extui %17 : i1 to i32
    %c0_i32_13 = arith.constant 0 : i32
    %19 = arith.cmpi ne, %18, %c0_i32_13 : i32
    scf.if %19 {
      %c0_18 = arith.constant 0 : index
      %c0_19 = arith.constant 0 : index
      %26 = vector.load %arg5[%c0_18, %c0_19] : memref<16x16xf32, #tpu.memory_space<vmem>>, vector<16x16xf32>
      tpu.vector_store %arg5[%c0_18, %c0_19], %15 {strides = array<i32>} : memref<16x16xf32, #tpu.memory_space<vmem>>, vector<16x16xf32>,
      %c0_20 = arith.constant 0 : index
      %c0_21 = arith.constant 0 : index
      %27 = vector.load %arg6[%c0_20, %c0_21] : memref<16x16xf32, #tpu.memory_space<vmem>>, vector<16x16xf32>
      tpu.vector_store %arg6[%c0_20, %c0_21], %16 {strides = array<i32>} : memref<16x16xf32, #tpu.memory_space<vmem>>, vector<16x16xf32>,
    } else {
    }
    %c0_i32_14 = arith.constant 0 : i32
    %20 = arith.cmpi sgt, %arg1, %c0_i32_14 : i32
    %21 = arith.extui %20 : i1 to i32
    %c0_i32_15 = arith.constant 0 : i32
    %22 = arith.cmpi ne, %21, %c0_i32_15 : i32
    scf.if %22 {
      %c0_18 = arith.constant 0 : index
      %c0_19 = arith.constant 0 : index
      %26 = vector.load %arg5[%c0_18, %c0_19] : memref<16x16xf32, #tpu.memory_space<vmem>>, vector<16x16xf32>
      %27 = arith.addf %26, %15 : vector<16x16xf32>
      %c0_20 = arith.constant 0 : index
      %c0_21 = arith.constant 0 : index
      %28 = vector.load %arg5[%c0_20, %c0_21] : memref<16x16xf32, #tpu.memory_space<vmem>>, vector<16x16xf32>
      tpu.vector_store %arg5[%c0_20, %c0_21], %27 {strides = array<i32>} : memref<16x16xf32, #tpu.memory_space<vmem>>, vector<16x16xf32>,
      %c0_22 = arith.constant 0 : index
      %c0_23 = arith.constant 0 : index
      %29 = vector.load %arg6[%c0_22, %c0_23] : memref<16x16xf32, #tpu.memory_space<vmem>>, vector<16x16xf32>
      %30 = arith.maximumf %29, %16 : vector<16x16xf32>
      %c0_24 = arith.constant 0 : index
      %c0_25 = arith.constant 0 : index
      %31 = vector.load %arg6[%c0_24, %c0_25] : memref<16x16xf32, #tpu.memory_space<vmem>>, vector<16x16xf32>
      tpu.vector_store %arg6[%c0_24, %c0_25], %30 {strides = array<i32>} : memref<16x16xf32, #tpu.memory_space<vmem>>, vector<16x16xf32>,
    } else {
    }
    %c0_i32_16 = arith.constant 0 : i32
    %23 = arith.cmpi eq, %arg1, %c0_i32_16 : i32
    %24 = arith.extui %23 : i1 to i32
    %c0_i32_17 = arith.constant 0 : i32
    %25 = arith.cmpi ne, %24, %c0_i32_17 : i32
    scf.if %25 {
      %c0_18 = arith.constant 0 : index
      %c0_19 = arith.constant 0 : index
      %26 = vector.load %arg5[%c0_18, %c0_19] : memref<16x16xf32, #tpu.memory_space<vmem>>, vector<16x16xf32>
      %cst = arith.constant 0.000000e+00 : f32
      %27 = vector.broadcast %cst : f32 to vector<16x112xf32>
      %28 = tpu.concatenate %26, %27 in 1 : vector<16x16xf32>, vector<16x112xf32> -> vector<16x128xf32>
      %cst_20 = arith.constant 0.000000e+00 : f32
      %29 = vector.broadcast %cst_20 : f32 to vector<8x128xf32>
      %30 = tpu.concatenate %28, %29 in 0 : vector<16x128xf32>, vector<8x128xf32> -> vector<24x128xf32>
      %c0_21 = arith.constant 0 : index
      %c0_22 = arith.constant 0 : index
      %31 = vector.load %arg6[%c0_21, %c0_22] : memref<16x16xf32, #tpu.memory_space<vmem>>, vector<16x16xf32>
      %cst_23 = arith.constant 0.000000e+00 : f32
      %32 = vector.broadcast %cst_23 : f32 to vector<16x112xf32>
      %33 = tpu.concatenate %31, %32 in 1 : vector<16x16xf32>, vector<16x112xf32> -> vector<16x128xf32>
      %cst_24 = arith.constant 0.000000e+00 : f32
      %34 = vector.broadcast %cst_24 : f32 to vector<8x128xf32>
      %35 = tpu.concatenate %33, %34 in 0 : vector<16x128xf32>, vector<8x128xf32> -> vector<24x128xf32>
      %c3_i32_25 = arith.constant 3 : i32
      %36 = tpu.dynamic_rotate %30 by %c3_i32_25 dim 0 : vector<24x128xf32>, i32 -> vector<24x128xf32>
      %37 = vector.extract_strided_slice %36 {offsets = [0, 0], sizes = [16, 128], strides = [1, 1]} : vector<24x128xf32> to vector<16x128xf32>
      %c3_i32_26 = arith.constant 3 : i32
      %38 = tpu.dynamic_rotate %37 by %c3_i32_26 dim 1 : vector<16x128xf32>, i32 -> vector<16x128xf32>
      %c0_27 = arith.constant 0 : index
      %39 = memref.load %arg3[%c0_27] : memref<98xf32, #tpu.memory_space<smem>>
      %40 = vector.broadcast %39 : f32 to vector<16x128xf32>
      %41 = arith.mulf %40, %38 : vector<16x128xf32>
      %c2_i32_28 = arith.constant 2 : i32
      %42 = tpu.dynamic_rotate %37 by %c2_i32_28 dim 1 : vector<16x128xf32>, i32 -> vector<16x128xf32>
      %c1 = arith.constant 1 : index
      %43 = memref.load %arg3[%c1] : memref<98xf32, #tpu.memory_space<smem>>
      %44 = vector.broadcast %43 : f32 to vector<16x128xf32>
      %45 = arith.mulf %44, %42 : vector<16x128xf32>
      %46 = arith.addf %41, %45 : vector<16x128xf32>
      %c1_i32_29 = arith.constant 1 : i32
      %47 = tpu.dynamic_rotate %37 by %c1_i32_29 dim 1 : vector<16x128xf32>, i32 -> vector<16x128xf32>
      %c2 = arith.constant 2 : index
      %48 = memref.load %arg3[%c2] : memref<98xf32, #tpu.memory_space<smem>>
      %49 = vector.broadcast %48 : f32 to vector<16x128xf32>
      %50 = arith.mulf %49, %47 : vector<16x128xf32>
      %51 = arith.addf %46, %50 : vector<16x128xf32>
      %c3 = arith.constant 3 : index
      %52 = memref.load %arg3[%c3] : memref<98xf32, #tpu.memory_space<smem>>
      %53 = vector.broadcast %52 : f32 to vector<16x128xf32>
      %54 = arith.mulf %53, %37 : vector<16x128xf32>
      %55 = arith.addf %51, %54 : vector<16x128xf32>
      %c127_i32 = arith.constant 127 : i32
      %56 = tpu.dynamic_rotate %37 by %c127_i32 dim 1 : vector<16x128xf32>, i32 -> vector<16x128xf32>
      %c4 = arith.constant 4 : index
      %57 = memref.load %arg3[%c4] : memref<98xf32, #tpu.memory_space<smem>>
      %58 = vector.broadcast %57 : f32 to vector<16x128xf32>
      %59 = arith.mulf %58, %56 : vector<16x128xf32>
      %60 = arith.addf %55, %59 : vector<16x128xf32>
      %c126_i32 = arith.constant 126 : i32
      %61 = tpu.dynamic_rotate %37 by %c126_i32 dim 1 : vector<16x128xf32>, i32 -> vector<16x128xf32>
      %c5 = arith.constant 5 : index
      %62 = memref.load %arg3[%c5] : memref<98xf32, #tpu.memory_space<smem>>
      %63 = vector.broadcast %62 : f32 to vector<16x128xf32>
      %64 = arith.mulf %63, %61 : vector<16x128xf32>
      %65 = arith.addf %60, %64 : vector<16x128xf32>
      %c125_i32 = arith.constant 125 : i32
      %66 = tpu.dynamic_rotate %37 by %c125_i32 dim 1 : vector<16x128xf32>, i32 -> vector<16x128xf32>
      %c6 = arith.constant 6 : index
      %67 = memref.load %arg3[%c6] : memref<98xf32, #tpu.memory_space<smem>>
      %68 = vector.broadcast %67 : f32 to vector<16x128xf32>
      %69 = arith.mulf %68, %66 : vector<16x128xf32>
      %70 = arith.addf %65, %69 : vector<16x128xf32>
      %c2_i32_30 = arith.constant 2 : i32
      %71 = tpu.dynamic_rotate %30 by %c2_i32_30 dim 0 : vector<24x128xf32>, i32 -> vector<24x128xf32>
      %72 = vector.extract_strided_slice %71 {offsets = [0, 0], sizes = [16, 128], strides = [1, 1]} : vector<24x128xf32> to vector<16x128xf32>
      %c3_i32_31 = arith.constant 3 : i32
      %73 = tpu.dynamic_rotate %72 by %c3_i32_31 dim 1 : vector<16x128xf32>, i32 -> vector<16x128xf32>
      %c7 = arith.constant 7 : index
      %74 = memref.load %arg3[%c7] : memref<98xf32, #tpu.memory_space<smem>>
      %75 = vector.broadcast %74 : f32 to vector<16x128xf32>
      %76 = arith.mulf %75, %73 : vector<16x128xf32>
      %c2_i32_32 = arith.constant 2 : i32
      %77 = tpu.dynamic_rotate %72 by %c2_i32_32 dim 1 : vector<16x128xf32>, i32 -> vector<16x128xf32>
      %c8 = arith.constant 8 : index
      %78 = memref.load %arg3[%c8] : memref<98xf32, #tpu.memory_space<smem>>
      %79 = vector.broadcast %78 : f32 to vector<16x128xf32>
      %80 = arith.mulf %79, %77 : vector<16x128xf32>
      %81 = arith.addf %76, %80 : vector<16x128xf32>
      %c1_i32_33 = arith.constant 1 : i32
      %82 = tpu.dynamic_rotate %72 by %c1_i32_33 dim 1 : vector<16x128xf32>, i32 -> vector<16x128xf32>
      %c9 = arith.constant 9 : index
      %83 = memref.load %arg3[%c9] : memref<98xf32, #tpu.memory_space<smem>>
      %84 = vector.broadcast %83 : f32 to vector<16x128xf32>
      %85 = arith.mulf %84, %82 : vector<16x128xf32>
      %86 = arith.addf %81, %85 : vector<16x128xf32>
      %c10 = arith.constant 10 : index
      %87 = memref.load %arg3[%c10] : memref<98xf32, #tpu.memory_space<smem>>
      %88 = vector.broadcast %87 : f32 to vector<16x128xf32>
      %89 = arith.mulf %88, %72 : vector<16x128xf32>
      %90 = arith.addf %86, %89 : vector<16x128xf32>
      %c127_i32_34 = arith.constant 127 : i32
      %91 = tpu.dynamic_rotate %72 by %c127_i32_34 dim 1 : vector<16x128xf32>, i32 -> vector<16x128xf32>
      %c11 = arith.constant 11 : index
      %92 = memref.load %arg3[%c11] : memref<98xf32, #tpu.memory_space<smem>>
      %93 = vector.broadcast %92 : f32 to vector<16x128xf32>
      %94 = arith.mulf %93, %91 : vector<16x128xf32>
      %95 = arith.addf %90, %94 : vector<16x128xf32>
      %c126_i32_35 = arith.constant 126 : i32
      %96 = tpu.dynamic_rotate %72 by %c126_i32_35 dim 1 : vector<16x128xf32>, i32 -> vector<16x128xf32>
      %c12 = arith.constant 12 : index
      %97 = memref.load %arg3[%c12] : memref<98xf32, #tpu.memory_space<smem>>
      %98 = vector.broadcast %97 : f32 to vector<16x128xf32>
      %99 = arith.mulf %98, %96 : vector<16x128xf32>
      %100 = arith.addf %95, %99 : vector<16x128xf32>
      %c125_i32_36 = arith.constant 125 : i32
      %101 = tpu.dynamic_rotate %72 by %c125_i32_36 dim 1 : vector<16x128xf32>, i32 -> vector<16x128xf32>
      %c13 = arith.constant 13 : index
      %102 = memref.load %arg3[%c13] : memref<98xf32, #tpu.memory_space<smem>>
      %103 = vector.broadcast %102 : f32 to vector<16x128xf32>
      %104 = arith.mulf %103, %101 : vector<16x128xf32>
      %105 = arith.addf %100, %104 : vector<16x128xf32>
      %c1_i32_37 = arith.constant 1 : i32
      %106 = tpu.dynamic_rotate %30 by %c1_i32_37 dim 0 : vector<24x128xf32>, i32 -> vector<24x128xf32>
      %107 = vector.extract_strided_slice %106 {offsets = [0, 0], sizes = [16, 128], strides = [1, 1]} : vector<24x128xf32> to vector<16x128xf32>
      %c3_i32_38 = arith.constant 3 : i32
      %108 = tpu.dynamic_rotate %107 by %c3_i32_38 dim 1 : vector<16x128xf32>, i32 -> vector<16x128xf32>
      %c14 = arith.constant 14 : index
      %109 = memref.load %arg3[%c14] : memref<98xf32, #tpu.memory_space<smem>>
      %110 = vector.broadcast %109 : f32 to vector<16x128xf32>
      %111 = arith.mulf %110, %108 : vector<16x128xf32>
      %112 = arith.addf %70, %111 : vector<16x128xf32>
      %c2_i32_39 = arith.constant 2 : i32
      %113 = tpu.dynamic_rotate %107 by %c2_i32_39 dim 1 : vector<16x128xf32>, i32 -> vector<16x128xf32>
      %c15 = arith.constant 15 : index
      %114 = memref.load %arg3[%c15] : memref<98xf32, #tpu.memory_space<smem>>
      %115 = vector.broadcast %114 : f32 to vector<16x128xf32>
      %116 = arith.mulf %115, %113 : vector<16x128xf32>
      %117 = arith.addf %112, %116 : vector<16x128xf32>
      %c1_i32_40 = arith.constant 1 : i32
      %118 = tpu.dynamic_rotate %107 by %c1_i32_40 dim 1 : vector<16x128xf32>, i32 -> vector<16x128xf32>
      %c16 = arith.constant 16 : index
      %119 = memref.load %arg3[%c16] : memref<98xf32, #tpu.memory_space<smem>>
      %120 = vector.broadcast %119 : f32 to vector<16x128xf32>
      %121 = arith.mulf %120, %118 : vector<16x128xf32>
      %122 = arith.addf %117, %121 : vector<16x128xf32>
      %c17 = arith.constant 17 : index
      %123 = memref.load %arg3[%c17] : memref<98xf32, #tpu.memory_space<smem>>
      %124 = vector.broadcast %123 : f32 to vector<16x128xf32>
      %125 = arith.mulf %124, %107 : vector<16x128xf32>
      %126 = arith.addf %122, %125 : vector<16x128xf32>
      %c127_i32_41 = arith.constant 127 : i32
      %127 = tpu.dynamic_rotate %107 by %c127_i32_41 dim 1 : vector<16x128xf32>, i32 -> vector<16x128xf32>
      %c18 = arith.constant 18 : index
      %128 = memref.load %arg3[%c18] : memref<98xf32, #tpu.memory_space<smem>>
      %129 = vector.broadcast %128 : f32 to vector<16x128xf32>
      %130 = arith.mulf %129, %127 : vector<16x128xf32>
      %131 = arith.addf %126, %130 : vector<16x128xf32>
      %c126_i32_42 = arith.constant 126 : i32
      %132 = tpu.dynamic_rotate %107 by %c126_i32_42 dim 1 : vector<16x128xf32>, i32 -> vector<16x128xf32>
      %c19 = arith.constant 19 : index
      %133 = memref.load %arg3[%c19] : memref<98xf32, #tpu.memory_space<smem>>
      %134 = vector.broadcast %133 : f32 to vector<16x128xf32>
      %135 = arith.mulf %134, %132 : vector<16x128xf32>
      %136 = arith.addf %131, %135 : vector<16x128xf32>
      %c125_i32_43 = arith.constant 125 : i32
      %137 = tpu.dynamic_rotate %107 by %c125_i32_43 dim 1 : vector<16x128xf32>, i32 -> vector<16x128xf32>
      %c20 = arith.constant 20 : index
      %138 = memref.load %arg3[%c20] : memref<98xf32, #tpu.memory_space<smem>>
      %139 = vector.broadcast %138 : f32 to vector<16x128xf32>
      %140 = arith.mulf %139, %137 : vector<16x128xf32>
      %141 = arith.addf %136, %140 : vector<16x128xf32>
      %142 = vector.extract_strided_slice %30 {offsets = [0, 0], sizes = [16, 128], strides = [1, 1]} : vector<24x128xf32> to vector<16x128xf32>
      %c3_i32_44 = arith.constant 3 : i32
      %143 = tpu.dynamic_rotate %142 by %c3_i32_44 dim 1 : vector<16x128xf32>, i32 -> vector<16x128xf32>
      %c21 = arith.constant 21 : index
      %144 = memref.load %arg3[%c21] : memref<98xf32, #tpu.memory_space<smem>>
      %145 = vector.broadcast %144 : f32 to vector<16x128xf32>
      %146 = arith.mulf %145, %143 : vector<16x128xf32>
      %147 = arith.addf %105, %146 : vector<16x128xf32>
      %c2_i32_45 = arith.constant 2 : i32
      %148 = tpu.dynamic_rotate %142 by %c2_i32_45 dim 1 : vector<16x128xf32>, i32 -> vector<16x128xf32>
      %c22 = arith.constant 22 : index
      %149 = memref.load %arg3[%c22] : memref<98xf32, #tpu.memory_space<smem>>
      %150 = vector.broadcast %149 : f32 to vector<16x128xf32>
      %151 = arith.mulf %150, %148 : vector<16x128xf32>
      %152 = arith.addf %147, %151 : vector<16x128xf32>
      %c1_i32_46 = arith.constant 1 : i32
      %153 = tpu.dynamic_rotate %142 by %c1_i32_46 dim 1 : vector<16x128xf32>, i32 -> vector<16x128xf32>
      %c23 = arith.constant 23 : index
      %154 = memref.load %arg3[%c23] : memref<98xf32, #tpu.memory_space<smem>>
      %155 = vector.broadcast %154 : f32 to vector<16x128xf32>
      %156 = arith.mulf %155, %153 : vector<16x128xf32>
      %157 = arith.addf %152, %156 : vector<16x128xf32>
      %c24 = arith.constant 24 : index
      %158 = memref.load %arg3[%c24] : memref<98xf32, #tpu.memory_space<smem>>
      %159 = vector.broadcast %158 : f32 to vector<16x128xf32>
      %160 = arith.mulf %159, %142 : vector<16x128xf32>
      %161 = arith.addf %157, %160 : vector<16x128xf32>
      %c127_i32_47 = arith.constant 127 : i32
      %162 = tpu.dynamic_rotate %142 by %c127_i32_47 dim 1 : vector<16x128xf32>, i32 -> vector<16x128xf32>
      %c25 = arith.constant 25 : index
      %163 = memref.load %arg3[%c25] : memref<98xf32, #tpu.memory_space<smem>>
      %164 = vector.broadcast %163 : f32 to vector<16x128xf32>
      %165 = arith.mulf %164, %162 : vector<16x128xf32>
      %166 = arith.addf %161, %165 : vector<16x128xf32>
      %c126_i32_48 = arith.constant 126 : i32
      %167 = tpu.dynamic_rotate %142 by %c126_i32_48 dim 1 : vector<16x128xf32>, i32 -> vector<16x128xf32>
      %c26 = arith.constant 26 : index
      %168 = memref.load %arg3[%c26] : memref<98xf32, #tpu.memory_space<smem>>
      %169 = vector.broadcast %168 : f32 to vector<16x128xf32>
      %170 = arith.mulf %169, %167 : vector<16x128xf32>
      %171 = arith.addf %166, %170 : vector<16x128xf32>
      %c125_i32_49 = arith.constant 125 : i32
      %172 = tpu.dynamic_rotate %142 by %c125_i32_49 dim 1 : vector<16x128xf32>, i32 -> vector<16x128xf32>
      %c27 = arith.constant 27 : index
      %173 = memref.load %arg3[%c27] : memref<98xf32, #tpu.memory_space<smem>>
      %174 = vector.broadcast %173 : f32 to vector<16x128xf32>
      %175 = arith.mulf %174, %172 : vector<16x128xf32>
      %176 = arith.addf %171, %175 : vector<16x128xf32>
      %c23_i32 = arith.constant 23 : i32
      %177 = tpu.dynamic_rotate %30 by %c23_i32 dim 0 : vector<24x128xf32>, i32 -> vector<24x128xf32>
      %178 = vector.extract_strided_slice %177 {offsets = [0, 0], sizes = [16, 128], strides = [1, 1]} : vector<24x128xf32> to vector<16x128xf32>
      %c3_i32_50 = arith.constant 3 : i32
      %179 = tpu.dynamic_rotate %178 by %c3_i32_50 dim 1 : vector<16x128xf32>, i32 -> vector<16x128xf32>
      %c28 = arith.constant 28 : index
      %180 = memref.load %arg3[%c28] : memref<98xf32, #tpu.memory_space<smem>>
      %181 = vector.broadcast %180 : f32 to vector<16x128xf32>
      %182 = arith.mulf %181, %179 : vector<16x128xf32>
      %183 = arith.addf %141, %182 : vector<16x128xf32>
      %c2_i32_51 = arith.constant 2 : i32
      %184 = tpu.dynamic_rotate %178 by %c2_i32_51 dim 1 : vector<16x128xf32>, i32 -> vector<16x128xf32>
      %c29 = arith.constant 29 : index
      %185 = memref.load %arg3[%c29] : memref<98xf32, #tpu.memory_space<smem>>
      %186 = vector.broadcast %185 : f32 to vector<16x128xf32>
      %187 = arith.mulf %186, %184 : vector<16x128xf32>
      %188 = arith.addf %183, %187 : vector<16x128xf32>
      %c1_i32_52 = arith.constant 1 : i32
      %189 = tpu.dynamic_rotate %178 by %c1_i32_52 dim 1 : vector<16x128xf32>, i32 -> vector<16x128xf32>
      %c30 = arith.constant 30 : index
      %190 = memref.load %arg3[%c30] : memref<98xf32, #tpu.memory_space<smem>>
      %191 = vector.broadcast %190 : f32 to vector<16x128xf32>
      %192 = arith.mulf %191, %189 : vector<16x128xf32>
      %193 = arith.addf %188, %192 : vector<16x128xf32>
      %c31 = arith.constant 31 : index
      %194 = memref.load %arg3[%c31] : memref<98xf32, #tpu.memory_space<smem>>
      %195 = vector.broadcast %194 : f32 to vector<16x128xf32>
      %196 = arith.mulf %195, %178 : vector<16x128xf32>
      %197 = arith.addf %193, %196 : vector<16x128xf32>
      %c127_i32_53 = arith.constant 127 : i32
      %198 = tpu.dynamic_rotate %178 by %c127_i32_53 dim 1 : vector<16x128xf32>, i32 -> vector<16x128xf32>
      %c32 = arith.constant 32 : index
      %199 = memref.load %arg3[%c32] : memref<98xf32, #tpu.memory_space<smem>>
      %200 = vector.broadcast %199 : f32 to vector<16x128xf32>
      %201 = arith.mulf %200, %198 : vector<16x128xf32>
      %202 = arith.addf %197, %201 : vector<16x128xf32>
      %c126_i32_54 = arith.constant 126 : i32
      %203 = tpu.dynamic_rotate %178 by %c126_i32_54 dim 1 : vector<16x128xf32>, i32 -> vector<16x128xf32>
      %c33 = arith.constant 33 : index
      %204 = memref.load %arg3[%c33] : memref<98xf32, #tpu.memory_space<smem>>
      %205 = vector.broadcast %204 : f32 to vector<16x128xf32>
      %206 = arith.mulf %205, %203 : vector<16x128xf32>
      %207 = arith.addf %202, %206 : vector<16x128xf32>
      %c125_i32_55 = arith.constant 125 : i32
      %208 = tpu.dynamic_rotate %178 by %c125_i32_55 dim 1 : vector<16x128xf32>, i32 -> vector<16x128xf32>
      %c34 = arith.constant 34 : index
      %209 = memref.load %arg3[%c34] : memref<98xf32, #tpu.memory_space<smem>>
      %210 = vector.broadcast %209 : f32 to vector<16x128xf32>
      %211 = arith.mulf %210, %208 : vector<16x128xf32>
      %212 = arith.addf %207, %211 : vector<16x128xf32>
      %c22_i32 = arith.constant 22 : i32
      %213 = tpu.dynamic_rotate %30 by %c22_i32 dim 0 : vector<24x128xf32>, i32 -> vector<24x128xf32>
      %214 = vector.extract_strided_slice %213 {offsets = [0, 0], sizes = [16, 128], strides = [1, 1]} : vector<24x128xf32> to vector<16x128xf32>
      %c3_i32_56 = arith.constant 3 : i32
      %215 = tpu.dynamic_rotate %214 by %c3_i32_56 dim 1 : vector<16x128xf32>, i32 -> vector<16x128xf32>
      %c35 = arith.constant 35 : index
      %216 = memref.load %arg3[%c35] : memref<98xf32, #tpu.memory_space<smem>>
      %217 = vector.broadcast %216 : f32 to vector<16x128xf32>
      %218 = arith.mulf %217, %215 : vector<16x128xf32>
      %219 = arith.addf %176, %218 : vector<16x128xf32>
      %c2_i32_57 = arith.constant 2 : i32
      %220 = tpu.dynamic_rotate %214 by %c2_i32_57 dim 1 : vector<16x128xf32>, i32 -> vector<16x128xf32>
      %c36 = arith.constant 36 : index
      %221 = memref.load %arg3[%c36] : memref<98xf32, #tpu.memory_space<smem>>
      %222 = vector.broadcast %221 : f32 to vector<16x128xf32>
      %223 = arith.mulf %222, %220 : vector<16x128xf32>
      %224 = arith.addf %219, %223 : vector<16x128xf32>
      %c1_i32_58 = arith.constant 1 : i32
      %225 = tpu.dynamic_rotate %214 by %c1_i32_58 dim 1 : vector<16x128xf32>, i32 -> vector<16x128xf32>
      %c37 = arith.constant 37 : index
      %226 = memref.load %arg3[%c37] : memref<98xf32, #tpu.memory_space<smem>>
      %227 = vector.broadcast %226 : f32 to vector<16x128xf32>
      %228 = arith.mulf %227, %225 : vector<16x128xf32>
      %229 = arith.addf %224, %228 : vector<16x128xf32>
      %c38 = arith.constant 38 : index
      %230 = memref.load %arg3[%c38] : memref<98xf32, #tpu.memory_space<smem>>
      %231 = vector.broadcast %230 : f32 to vector<16x128xf32>
      %232 = arith.mulf %231, %214 : vector<16x128xf32>
      %233 = arith.addf %229, %232 : vector<16x128xf32>
      %c127_i32_59 = arith.constant 127 : i32
      %234 = tpu.dynamic_rotate %214 by %c127_i32_59 dim 1 : vector<16x128xf32>, i32 -> vector<16x128xf32>
      %c39 = arith.constant 39 : index
      %235 = memref.load %arg3[%c39] : memref<98xf32, #tpu.memory_space<smem>>
      %236 = vector.broadcast %235 : f32 to vector<16x128xf32>
      %237 = arith.mulf %236, %234 : vector<16x128xf32>
      %238 = arith.addf %233, %237 : vector<16x128xf32>
      %c126_i32_60 = arith.constant 126 : i32
      %239 = tpu.dynamic_rotate %214 by %c126_i32_60 dim 1 : vector<16x128xf32>, i32 -> vector<16x128xf32>
      %c40 = arith.constant 40 : index
      %240 = memref.load %arg3[%c40] : memref<98xf32, #tpu.memory_space<smem>>
      %241 = vector.broadcast %240 : f32 to vector<16x128xf32>
      %242 = arith.mulf %241, %239 : vector<16x128xf32>
      %243 = arith.addf %238, %242 : vector<16x128xf32>
      %c125_i32_61 = arith.constant 125 : i32
      %244 = tpu.dynamic_rotate %214 by %c125_i32_61 dim 1 : vector<16x128xf32>, i32 -> vector<16x128xf32>
      %c41 = arith.constant 41 : index
      %245 = memref.load %arg3[%c41] : memref<98xf32, #tpu.memory_space<smem>>
      %246 = vector.broadcast %245 : f32 to vector<16x128xf32>
      %247 = arith.mulf %246, %244 : vector<16x128xf32>
      %248 = arith.addf %243, %247 : vector<16x128xf32>
      %c21_i32 = arith.constant 21 : i32
      %249 = tpu.dynamic_rotate %30 by %c21_i32 dim 0 : vector<24x128xf32>, i32 -> vector<24x128xf32>
      %250 = vector.extract_strided_slice %249 {offsets = [0, 0], sizes = [16, 128], strides = [1, 1]} : vector<24x128xf32> to vector<16x128xf32>
      %c3_i32_62 = arith.constant 3 : i32
      %251 = tpu.dynamic_rotate %250 by %c3_i32_62 dim 1 : vector<16x128xf32>, i32 -> vector<16x128xf32>
      %c42 = arith.constant 42 : index
      %252 = memref.load %arg3[%c42] : memref<98xf32, #tpu.memory_space<smem>>
      %253 = vector.broadcast %252 : f32 to vector<16x128xf32>
      %254 = arith.mulf %253, %251 : vector<16x128xf32>
      %255 = arith.addf %212, %254 : vector<16x128xf32>
      %c2_i32_63 = arith.constant 2 : i32
      %256 = tpu.dynamic_rotate %250 by %c2_i32_63 dim 1 : vector<16x128xf32>, i32 -> vector<16x128xf32>
      %c43 = arith.constant 43 : index
      %257 = memref.load %arg3[%c43] : memref<98xf32, #tpu.memory_space<smem>>
      %258 = vector.broadcast %257 : f32 to vector<16x128xf32>
      %259 = arith.mulf %258, %256 : vector<16x128xf32>
      %260 = arith.addf %255, %259 : vector<16x128xf32>
      %c1_i32_64 = arith.constant 1 : i32
      %261 = tpu.dynamic_rotate %250 by %c1_i32_64 dim 1 : vector<16x128xf32>, i32 -> vector<16x128xf32>
      %c44 = arith.constant 44 : index
      %262 = memref.load %arg3[%c44] : memref<98xf32, #tpu.memory_space<smem>>
      %263 = vector.broadcast %262 : f32 to vector<16x128xf32>
      %264 = arith.mulf %263, %261 : vector<16x128xf32>
      %265 = arith.addf %260, %264 : vector<16x128xf32>
      %c45 = arith.constant 45 : index
      %266 = memref.load %arg3[%c45] : memref<98xf32, #tpu.memory_space<smem>>
      %267 = vector.broadcast %266 : f32 to vector<16x128xf32>
      %268 = arith.mulf %267, %250 : vector<16x128xf32>
      %269 = arith.addf %265, %268 : vector<16x128xf32>
      %c127_i32_65 = arith.constant 127 : i32
      %270 = tpu.dynamic_rotate %250 by %c127_i32_65 dim 1 : vector<16x128xf32>, i32 -> vector<16x128xf32>
      %c46 = arith.constant 46 : index
      %271 = memref.load %arg3[%c46] : memref<98xf32, #tpu.memory_space<smem>>
      %272 = vector.broadcast %271 : f32 to vector<16x128xf32>
      %273 = arith.mulf %272, %270 : vector<16x128xf32>
      %274 = arith.addf %269, %273 : vector<16x128xf32>
      %c126_i32_66 = arith.constant 126 : i32
      %275 = tpu.dynamic_rotate %250 by %c126_i32_66 dim 1 : vector<16x128xf32>, i32 -> vector<16x128xf32>
      %c47 = arith.constant 47 : index
      %276 = memref.load %arg3[%c47] : memref<98xf32, #tpu.memory_space<smem>>
      %277 = vector.broadcast %276 : f32 to vector<16x128xf32>
      %278 = arith.mulf %277, %275 : vector<16x128xf32>
      %279 = arith.addf %274, %278 : vector<16x128xf32>
      %c125_i32_67 = arith.constant 125 : i32
      %280 = tpu.dynamic_rotate %250 by %c125_i32_67 dim 1 : vector<16x128xf32>, i32 -> vector<16x128xf32>
      %c48 = arith.constant 48 : index
      %281 = memref.load %arg3[%c48] : memref<98xf32, #tpu.memory_space<smem>>
      %282 = vector.broadcast %281 : f32 to vector<16x128xf32>
      %283 = arith.mulf %282, %280 : vector<16x128xf32>
      %284 = arith.addf %279, %283 : vector<16x128xf32>
      %c3_i32_68 = arith.constant 3 : i32
      %285 = tpu.dynamic_rotate %35 by %c3_i32_68 dim 0 : vector<24x128xf32>, i32 -> vector<24x128xf32>
      %286 = vector.extract_strided_slice %285 {offsets = [0, 0], sizes = [16, 128], strides = [1, 1]} : vector<24x128xf32> to vector<16x128xf32>
      %c3_i32_69 = arith.constant 3 : i32
      %287 = tpu.dynamic_rotate %286 by %c3_i32_69 dim 1 : vector<16x128xf32>, i32 -> vector<16x128xf32>
      %c49 = arith.constant 49 : index
      %288 = memref.load %arg3[%c49] : memref<98xf32, #tpu.memory_space<smem>>
      %289 = vector.broadcast %288 : f32 to vector<16x128xf32>
      %290 = arith.mulf %289, %287 : vector<16x128xf32>
      %c2_i32_70 = arith.constant 2 : i32
      %291 = tpu.dynamic_rotate %286 by %c2_i32_70 dim 1 : vector<16x128xf32>, i32 -> vector<16x128xf32>
      %c50 = arith.constant 50 : index
      %292 = memref.load %arg3[%c50] : memref<98xf32, #tpu.memory_space<smem>>
      %293 = vector.broadcast %292 : f32 to vector<16x128xf32>
      %294 = arith.mulf %293, %291 : vector<16x128xf32>
      %295 = arith.addf %290, %294 : vector<16x128xf32>
      %c1_i32_71 = arith.constant 1 : i32
      %296 = tpu.dynamic_rotate %286 by %c1_i32_71 dim 1 : vector<16x128xf32>, i32 -> vector<16x128xf32>
      %c51 = arith.constant 51 : index
      %297 = memref.load %arg3[%c51] : memref<98xf32, #tpu.memory_space<smem>>
      %298 = vector.broadcast %297 : f32 to vector<16x128xf32>
      %299 = arith.mulf %298, %296 : vector<16x128xf32>
      %300 = arith.addf %295, %299 : vector<16x128xf32>
      %c52 = arith.constant 52 : index
      %301 = memref.load %arg3[%c52] : memref<98xf32, #tpu.memory_space<smem>>
      %302 = vector.broadcast %301 : f32 to vector<16x128xf32>
      %303 = arith.mulf %302, %286 : vector<16x128xf32>
      %304 = arith.addf %300, %303 : vector<16x128xf32>
      %c127_i32_72 = arith.constant 127 : i32
      %305 = tpu.dynamic_rotate %286 by %c127_i32_72 dim 1 : vector<16x128xf32>, i32 -> vector<16x128xf32>
      %c53 = arith.constant 53 : index
      %306 = memref.load %arg3[%c53] : memref<98xf32, #tpu.memory_space<smem>>
      %307 = vector.broadcast %306 : f32 to vector<16x128xf32>
      %308 = arith.mulf %307, %305 : vector<16x128xf32>
      %309 = arith.addf %304, %308 : vector<16x128xf32>
      %c126_i32_73 = arith.constant 126 : i32
      %310 = tpu.dynamic_rotate %286 by %c126_i32_73 dim 1 : vector<16x128xf32>, i32 -> vector<16x128xf32>
      %c54 = arith.constant 54 : index
      %311 = memref.load %arg3[%c54] : memref<98xf32, #tpu.memory_space<smem>>
      %312 = vector.broadcast %311 : f32 to vector<16x128xf32>
      %313 = arith.mulf %312, %310 : vector<16x128xf32>
      %314 = arith.addf %309, %313 : vector<16x128xf32>
      %c125_i32_74 = arith.constant 125 : i32
      %315 = tpu.dynamic_rotate %286 by %c125_i32_74 dim 1 : vector<16x128xf32>, i32 -> vector<16x128xf32>
      %c55 = arith.constant 55 : index
      %316 = memref.load %arg3[%c55] : memref<98xf32, #tpu.memory_space<smem>>
      %317 = vector.broadcast %316 : f32 to vector<16x128xf32>
      %318 = arith.mulf %317, %315 : vector<16x128xf32>
      %319 = arith.addf %314, %318 : vector<16x128xf32>
      %c2_i32_75 = arith.constant 2 : i32
      %320 = tpu.dynamic_rotate %35 by %c2_i32_75 dim 0 : vector<24x128xf32>, i32 -> vector<24x128xf32>
      %321 = vector.extract_strided_slice %320 {offsets = [0, 0], sizes = [16, 128], strides = [1, 1]} : vector<24x128xf32> to vector<16x128xf32>
      %c3_i32_76 = arith.constant 3 : i32
      %322 = tpu.dynamic_rotate %321 by %c3_i32_76 dim 1 : vector<16x128xf32>, i32 -> vector<16x128xf32>
      %c56 = arith.constant 56 : index
      %323 = memref.load %arg3[%c56] : memref<98xf32, #tpu.memory_space<smem>>
      %324 = vector.broadcast %323 : f32 to vector<16x128xf32>
      %325 = arith.mulf %324, %322 : vector<16x128xf32>
      %c2_i32_77 = arith.constant 2 : i32
      %326 = tpu.dynamic_rotate %321 by %c2_i32_77 dim 1 : vector<16x128xf32>, i32 -> vector<16x128xf32>
      %c57 = arith.constant 57 : index
      %327 = memref.load %arg3[%c57] : memref<98xf32, #tpu.memory_space<smem>>
      %328 = vector.broadcast %327 : f32 to vector<16x128xf32>
      %329 = arith.mulf %328, %326 : vector<16x128xf32>
      %330 = arith.addf %325, %329 : vector<16x128xf32>
      %c1_i32_78 = arith.constant 1 : i32
      %331 = tpu.dynamic_rotate %321 by %c1_i32_78 dim 1 : vector<16x128xf32>, i32 -> vector<16x128xf32>
      %c58 = arith.constant 58 : index
      %332 = memref.load %arg3[%c58] : memref<98xf32, #tpu.memory_space<smem>>
      %333 = vector.broadcast %332 : f32 to vector<16x128xf32>
      %334 = arith.mulf %333, %331 : vector<16x128xf32>
      %335 = arith.addf %330, %334 : vector<16x128xf32>
      %c59 = arith.constant 59 : index
      %336 = memref.load %arg3[%c59] : memref<98xf32, #tpu.memory_space<smem>>
      %337 = vector.broadcast %336 : f32 to vector<16x128xf32>
      %338 = arith.mulf %337, %321 : vector<16x128xf32>
      %339 = arith.addf %335, %338 : vector<16x128xf32>
      %c127_i32_79 = arith.constant 127 : i32
      %340 = tpu.dynamic_rotate %321 by %c127_i32_79 dim 1 : vector<16x128xf32>, i32 -> vector<16x128xf32>
      %c60 = arith.constant 60 : index
      %341 = memref.load %arg3[%c60] : memref<98xf32, #tpu.memory_space<smem>>
      %342 = vector.broadcast %341 : f32 to vector<16x128xf32>
      %343 = arith.mulf %342, %340 : vector<16x128xf32>
      %344 = arith.addf %339, %343 : vector<16x128xf32>
      %c126_i32_80 = arith.constant 126 : i32
      %345 = tpu.dynamic_rotate %321 by %c126_i32_80 dim 1 : vector<16x128xf32>, i32 -> vector<16x128xf32>
      %c61 = arith.constant 61 : index
      %346 = memref.load %arg3[%c61] : memref<98xf32, #tpu.memory_space<smem>>
      %347 = vector.broadcast %346 : f32 to vector<16x128xf32>
      %348 = arith.mulf %347, %345 : vector<16x128xf32>
      %349 = arith.addf %344, %348 : vector<16x128xf32>
      %c125_i32_81 = arith.constant 125 : i32
      %350 = tpu.dynamic_rotate %321 by %c125_i32_81 dim 1 : vector<16x128xf32>, i32 -> vector<16x128xf32>
      %c62 = arith.constant 62 : index
      %351 = memref.load %arg3[%c62] : memref<98xf32, #tpu.memory_space<smem>>
      %352 = vector.broadcast %351 : f32 to vector<16x128xf32>
      %353 = arith.mulf %352, %350 : vector<16x128xf32>
      %354 = arith.addf %349, %353 : vector<16x128xf32>
      %c1_i32_82 = arith.constant 1 : i32
      %355 = tpu.dynamic_rotate %35 by %c1_i32_82 dim 0 : vector<24x128xf32>, i32 -> vector<24x128xf32>
      %356 = vector.extract_strided_slice %355 {offsets = [0, 0], sizes = [16, 128], strides = [1, 1]} : vector<24x128xf32> to vector<16x128xf32>
      %c3_i32_83 = arith.constant 3 : i32
      %357 = tpu.dynamic_rotate %356 by %c3_i32_83 dim 1 : vector<16x128xf32>, i32 -> vector<16x128xf32>
      %c63 = arith.constant 63 : index
      %358 = memref.load %arg3[%c63] : memref<98xf32, #tpu.memory_space<smem>>
      %359 = vector.broadcast %358 : f32 to vector<16x128xf32>
      %360 = arith.mulf %359, %357 : vector<16x128xf32>
      %361 = arith.addf %319, %360 : vector<16x128xf32>
      %c2_i32_84 = arith.constant 2 : i32
      %362 = tpu.dynamic_rotate %356 by %c2_i32_84 dim 1 : vector<16x128xf32>, i32 -> vector<16x128xf32>
      %c64 = arith.constant 64 : index
      %363 = memref.load %arg3[%c64] : memref<98xf32, #tpu.memory_space<smem>>
      %364 = vector.broadcast %363 : f32 to vector<16x128xf32>
      %365 = arith.mulf %364, %362 : vector<16x128xf32>
      %366 = arith.addf %361, %365 : vector<16x128xf32>
      %c1_i32_85 = arith.constant 1 : i32
      %367 = tpu.dynamic_rotate %356 by %c1_i32_85 dim 1 : vector<16x128xf32>, i32 -> vector<16x128xf32>
      %c65 = arith.constant 65 : index
      %368 = memref.load %arg3[%c65] : memref<98xf32, #tpu.memory_space<smem>>
      %369 = vector.broadcast %368 : f32 to vector<16x128xf32>
      %370 = arith.mulf %369, %367 : vector<16x128xf32>
      %371 = arith.addf %366, %370 : vector<16x128xf32>
      %c66 = arith.constant 66 : index
      %372 = memref.load %arg3[%c66] : memref<98xf32, #tpu.memory_space<smem>>
      %373 = vector.broadcast %372 : f32 to vector<16x128xf32>
      %374 = arith.mulf %373, %356 : vector<16x128xf32>
      %375 = arith.addf %371, %374 : vector<16x128xf32>
      %c127_i32_86 = arith.constant 127 : i32
      %376 = tpu.dynamic_rotate %356 by %c127_i32_86 dim 1 : vector<16x128xf32>, i32 -> vector<16x128xf32>
      %c67 = arith.constant 67 : index
      %377 = memref.load %arg3[%c67] : memref<98xf32, #tpu.memory_space<smem>>
      %378 = vector.broadcast %377 : f32 to vector<16x128xf32>
      %379 = arith.mulf %378, %376 : vector<16x128xf32>
      %380 = arith.addf %375, %379 : vector<16x128xf32>
      %c126_i32_87 = arith.constant 126 : i32
      %381 = tpu.dynamic_rotate %356 by %c126_i32_87 dim 1 : vector<16x128xf32>, i32 -> vector<16x128xf32>
      %c68 = arith.constant 68 : index
      %382 = memref.load %arg3[%c68] : memref<98xf32, #tpu.memory_space<smem>>
      %383 = vector.broadcast %382 : f32 to vector<16x128xf32>
      %384 = arith.mulf %383, %381 : vector<16x128xf32>
      %385 = arith.addf %380, %384 : vector<16x128xf32>
      %c125_i32_88 = arith.constant 125 : i32
      %386 = tpu.dynamic_rotate %356 by %c125_i32_88 dim 1 : vector<16x128xf32>, i32 -> vector<16x128xf32>
      %c69 = arith.constant 69 : index
      %387 = memref.load %arg3[%c69] : memref<98xf32, #tpu.memory_space<smem>>
      %388 = vector.broadcast %387 : f32 to vector<16x128xf32>
      %389 = arith.mulf %388, %386 : vector<16x128xf32>
      %390 = arith.addf %385, %389 : vector<16x128xf32>
      %391 = vector.extract_strided_slice %35 {offsets = [0, 0], sizes = [16, 128], strides = [1, 1]} : vector<24x128xf32> to vector<16x128xf32>
      %c3_i32_89 = arith.constant 3 : i32
      %392 = tpu.dynamic_rotate %391 by %c3_i32_89 dim 1 : vector<16x128xf32>, i32 -> vector<16x128xf32>
      %c70 = arith.constant 70 : index
      %393 = memref.load %arg3[%c70] : memref<98xf32, #tpu.memory_space<smem>>
      %394 = vector.broadcast %393 : f32 to vector<16x128xf32>
      %395 = arith.mulf %394, %392 : vector<16x128xf32>
      %396 = arith.addf %354, %395 : vector<16x128xf32>
      %c2_i32_90 = arith.constant 2 : i32
      %397 = tpu.dynamic_rotate %391 by %c2_i32_90 dim 1 : vector<16x128xf32>, i32 -> vector<16x128xf32>
      %c71 = arith.constant 71 : index
      %398 = memref.load %arg3[%c71] : memref<98xf32, #tpu.memory_space<smem>>
      %399 = vector.broadcast %398 : f32 to vector<16x128xf32>
      %400 = arith.mulf %399, %397 : vector<16x128xf32>
      %401 = arith.addf %396, %400 : vector<16x128xf32>
      %c1_i32_91 = arith.constant 1 : i32
      %402 = tpu.dynamic_rotate %391 by %c1_i32_91 dim 1 : vector<16x128xf32>, i32 -> vector<16x128xf32>
      %c72 = arith.constant 72 : index
      %403 = memref.load %arg3[%c72] : memref<98xf32, #tpu.memory_space<smem>>
      %404 = vector.broadcast %403 : f32 to vector<16x128xf32>
      %405 = arith.mulf %404, %402 : vector<16x128xf32>
      %406 = arith.addf %401, %405 : vector<16x128xf32>
      %c73 = arith.constant 73 : index
      %407 = memref.load %arg3[%c73] : memref<98xf32, #tpu.memory_space<smem>>
      %408 = vector.broadcast %407 : f32 to vector<16x128xf32>
      %409 = arith.mulf %408, %391 : vector<16x128xf32>
      %410 = arith.addf %406, %409 : vector<16x128xf32>
      %c127_i32_92 = arith.constant 127 : i32
      %411 = tpu.dynamic_rotate %391 by %c127_i32_92 dim 1 : vector<16x128xf32>, i32 -> vector<16x128xf32>
      %c74 = arith.constant 74 : index
      %412 = memref.load %arg3[%c74] : memref<98xf32, #tpu.memory_space<smem>>
      %413 = vector.broadcast %412 : f32 to vector<16x128xf32>
      %414 = arith.mulf %413, %411 : vector<16x128xf32>
      %415 = arith.addf %410, %414 : vector<16x128xf32>
      %c126_i32_93 = arith.constant 126 : i32
      %416 = tpu.dynamic_rotate %391 by %c126_i32_93 dim 1 : vector<16x128xf32>, i32 -> vector<16x128xf32>
      %c75 = arith.constant 75 : index
      %417 = memref.load %arg3[%c75] : memref<98xf32, #tpu.memory_space<smem>>
      %418 = vector.broadcast %417 : f32 to vector<16x128xf32>
      %419 = arith.mulf %418, %416 : vector<16x128xf32>
      %420 = arith.addf %415, %419 : vector<16x128xf32>
      %c125_i32_94 = arith.constant 125 : i32
      %421 = tpu.dynamic_rotate %391 by %c125_i32_94 dim 1 : vector<16x128xf32>, i32 -> vector<16x128xf32>
      %c76 = arith.constant 76 : index
      %422 = memref.load %arg3[%c76] : memref<98xf32, #tpu.memory_space<smem>>
      %423 = vector.broadcast %422 : f32 to vector<16x128xf32>
      %424 = arith.mulf %423, %421 : vector<16x128xf32>
      %425 = arith.addf %420, %424 : vector<16x128xf32>
      %c23_i32_95 = arith.constant 23 : i32
      %426 = tpu.dynamic_rotate %35 by %c23_i32_95 dim 0 : vector<24x128xf32>, i32 -> vector<24x128xf32>
      %427 = vector.extract_strided_slice %426 {offsets = [0, 0], sizes = [16, 128], strides = [1, 1]} : vector<24x128xf32> to vector<16x128xf32>
      %c3_i32_96 = arith.constant 3 : i32
      %428 = tpu.dynamic_rotate %427 by %c3_i32_96 dim 1 : vector<16x128xf32>, i32 -> vector<16x128xf32>
      %c77 = arith.constant 77 : index
      %429 = memref.load %arg3[%c77] : memref<98xf32, #tpu.memory_space<smem>>
      %430 = vector.broadcast %429 : f32 to vector<16x128xf32>
      %431 = arith.mulf %430, %428 : vector<16x128xf32>
      %432 = arith.addf %390, %431 : vector<16x128xf32>
      %c2_i32_97 = arith.constant 2 : i32
      %433 = tpu.dynamic_rotate %427 by %c2_i32_97 dim 1 : vector<16x128xf32>, i32 -> vector<16x128xf32>
      %c78 = arith.constant 78 : index
      %434 = memref.load %arg3[%c78] : memref<98xf32, #tpu.memory_space<smem>>
      %435 = vector.broadcast %434 : f32 to vector<16x128xf32>
      %436 = arith.mulf %435, %433 : vector<16x128xf32>
      %437 = arith.addf %432, %436 : vector<16x128xf32>
      %c1_i32_98 = arith.constant 1 : i32
      %438 = tpu.dynamic_rotate %427 by %c1_i32_98 dim 1 : vector<16x128xf32>, i32 -> vector<16x128xf32>
      %c79 = arith.constant 79 : index
      %439 = memref.load %arg3[%c79] : memref<98xf32, #tpu.memory_space<smem>>
      %440 = vector.broadcast %439 : f32 to vector<16x128xf32>
      %441 = arith.mulf %440, %438 : vector<16x128xf32>
      %442 = arith.addf %437, %441 : vector<16x128xf32>
      %c80 = arith.constant 80 : index
      %443 = memref.load %arg3[%c80] : memref<98xf32, #tpu.memory_space<smem>>
      %444 = vector.broadcast %443 : f32 to vector<16x128xf32>
      %445 = arith.mulf %444, %427 : vector<16x128xf32>
      %446 = arith.addf %442, %445 : vector<16x128xf32>
      %c127_i32_99 = arith.constant 127 : i32
      %447 = tpu.dynamic_rotate %427 by %c127_i32_99 dim 1 : vector<16x128xf32>, i32 -> vector<16x128xf32>
      %c81 = arith.constant 81 : index
      %448 = memref.load %arg3[%c81] : memref<98xf32, #tpu.memory_space<smem>>
      %449 = vector.broadcast %448 : f32 to vector<16x128xf32>
      %450 = arith.mulf %449, %447 : vector<16x128xf32>
      %451 = arith.addf %446, %450 : vector<16x128xf32>
      %c126_i32_100 = arith.constant 126 : i32
      %452 = tpu.dynamic_rotate %427 by %c126_i32_100 dim 1 : vector<16x128xf32>, i32 -> vector<16x128xf32>
      %c82 = arith.constant 82 : index
      %453 = memref.load %arg3[%c82] : memref<98xf32, #tpu.memory_space<smem>>
      %454 = vector.broadcast %453 : f32 to vector<16x128xf32>
      %455 = arith.mulf %454, %452 : vector<16x128xf32>
      %456 = arith.addf %451, %455 : vector<16x128xf32>
      %c125_i32_101 = arith.constant 125 : i32
      %457 = tpu.dynamic_rotate %427 by %c125_i32_101 dim 1 : vector<16x128xf32>, i32 -> vector<16x128xf32>
      %c83 = arith.constant 83 : index
      %458 = memref.load %arg3[%c83] : memref<98xf32, #tpu.memory_space<smem>>
      %459 = vector.broadcast %458 : f32 to vector<16x128xf32>
      %460 = arith.mulf %459, %457 : vector<16x128xf32>
      %461 = arith.addf %456, %460 : vector<16x128xf32>
      %c22_i32_102 = arith.constant 22 : i32
      %462 = tpu.dynamic_rotate %35 by %c22_i32_102 dim 0 : vector<24x128xf32>, i32 -> vector<24x128xf32>
      %463 = vector.extract_strided_slice %462 {offsets = [0, 0], sizes = [16, 128], strides = [1, 1]} : vector<24x128xf32> to vector<16x128xf32>
      %c3_i32_103 = arith.constant 3 : i32
      %464 = tpu.dynamic_rotate %463 by %c3_i32_103 dim 1 : vector<16x128xf32>, i32 -> vector<16x128xf32>
      %c84 = arith.constant 84 : index
      %465 = memref.load %arg3[%c84] : memref<98xf32, #tpu.memory_space<smem>>
      %466 = vector.broadcast %465 : f32 to vector<16x128xf32>
      %467 = arith.mulf %466, %464 : vector<16x128xf32>
      %468 = arith.addf %425, %467 : vector<16x128xf32>
      %c2_i32_104 = arith.constant 2 : i32
      %469 = tpu.dynamic_rotate %463 by %c2_i32_104 dim 1 : vector<16x128xf32>, i32 -> vector<16x128xf32>
      %c85 = arith.constant 85 : index
      %470 = memref.load %arg3[%c85] : memref<98xf32, #tpu.memory_space<smem>>
      %471 = vector.broadcast %470 : f32 to vector<16x128xf32>
      %472 = arith.mulf %471, %469 : vector<16x128xf32>
      %473 = arith.addf %468, %472 : vector<16x128xf32>
      %c1_i32_105 = arith.constant 1 : i32
      %474 = tpu.dynamic_rotate %463 by %c1_i32_105 dim 1 : vector<16x128xf32>, i32 -> vector<16x128xf32>
      %c86 = arith.constant 86 : index
      %475 = memref.load %arg3[%c86] : memref<98xf32, #tpu.memory_space<smem>>
      %476 = vector.broadcast %475 : f32 to vector<16x128xf32>
      %477 = arith.mulf %476, %474 : vector<16x128xf32>
      %478 = arith.addf %473, %477 : vector<16x128xf32>
      %c87 = arith.constant 87 : index
      %479 = memref.load %arg3[%c87] : memref<98xf32, #tpu.memory_space<smem>>
      %480 = vector.broadcast %479 : f32 to vector<16x128xf32>
      %481 = arith.mulf %480, %463 : vector<16x128xf32>
      %482 = arith.addf %478, %481 : vector<16x128xf32>
      %c127_i32_106 = arith.constant 127 : i32
      %483 = tpu.dynamic_rotate %463 by %c127_i32_106 dim 1 : vector<16x128xf32>, i32 -> vector<16x128xf32>
      %c88 = arith.constant 88 : index
      %484 = memref.load %arg3[%c88] : memref<98xf32, #tpu.memory_space<smem>>
      %485 = vector.broadcast %484 : f32 to vector<16x128xf32>
      %486 = arith.mulf %485, %483 : vector<16x128xf32>
      %487 = arith.addf %482, %486 : vector<16x128xf32>
      %c126_i32_107 = arith.constant 126 : i32
      %488 = tpu.dynamic_rotate %463 by %c126_i32_107 dim 1 : vector<16x128xf32>, i32 -> vector<16x128xf32>
      %c89 = arith.constant 89 : index
      %489 = memref.load %arg3[%c89] : memref<98xf32, #tpu.memory_space<smem>>
      %490 = vector.broadcast %489 : f32 to vector<16x128xf32>
      %491 = arith.mulf %490, %488 : vector<16x128xf32>
      %492 = arith.addf %487, %491 : vector<16x128xf32>
      %c125_i32_108 = arith.constant 125 : i32
      %493 = tpu.dynamic_rotate %463 by %c125_i32_108 dim 1 : vector<16x128xf32>, i32 -> vector<16x128xf32>
      %c90 = arith.constant 90 : index
      %494 = memref.load %arg3[%c90] : memref<98xf32, #tpu.memory_space<smem>>
      %495 = vector.broadcast %494 : f32 to vector<16x128xf32>
      %496 = arith.mulf %495, %493 : vector<16x128xf32>
      %497 = arith.addf %492, %496 : vector<16x128xf32>
      %c21_i32_109 = arith.constant 21 : i32
      %498 = tpu.dynamic_rotate %35 by %c21_i32_109 dim 0 : vector<24x128xf32>, i32 -> vector<24x128xf32>
      %499 = vector.extract_strided_slice %498 {offsets = [0, 0], sizes = [16, 128], strides = [1, 1]} : vector<24x128xf32> to vector<16x128xf32>
      %c3_i32_110 = arith.constant 3 : i32
      %500 = tpu.dynamic_rotate %499 by %c3_i32_110 dim 1 : vector<16x128xf32>, i32 -> vector<16x128xf32>
      %c91 = arith.constant 91 : index
      %501 = memref.load %arg3[%c91] : memref<98xf32, #tpu.memory_space<smem>>
      %502 = vector.broadcast %501 : f32 to vector<16x128xf32>
      %503 = arith.mulf %502, %500 : vector<16x128xf32>
      %504 = arith.addf %461, %503 : vector<16x128xf32>
      %c2_i32_111 = arith.constant 2 : i32
      %505 = tpu.dynamic_rotate %499 by %c2_i32_111 dim 1 : vector<16x128xf32>, i32 -> vector<16x128xf32>
      %c92 = arith.constant 92 : index
      %506 = memref.load %arg3[%c92] : memref<98xf32, #tpu.memory_space<smem>>
      %507 = vector.broadcast %506 : f32 to vector<16x128xf32>
      %508 = arith.mulf %507, %505 : vector<16x128xf32>
      %509 = arith.addf %504, %508 : vector<16x128xf32>
      %c1_i32_112 = arith.constant 1 : i32
      %510 = tpu.dynamic_rotate %499 by %c1_i32_112 dim 1 : vector<16x128xf32>, i32 -> vector<16x128xf32>
      %c93 = arith.constant 93 : index
      %511 = memref.load %arg3[%c93] : memref<98xf32, #tpu.memory_space<smem>>
      %512 = vector.broadcast %511 : f32 to vector<16x128xf32>
      %513 = arith.mulf %512, %510 : vector<16x128xf32>
      %514 = arith.addf %509, %513 : vector<16x128xf32>
      %c94 = arith.constant 94 : index
      %515 = memref.load %arg3[%c94] : memref<98xf32, #tpu.memory_space<smem>>
      %516 = vector.broadcast %515 : f32 to vector<16x128xf32>
      %517 = arith.mulf %516, %499 : vector<16x128xf32>
      %518 = arith.addf %514, %517 : vector<16x128xf32>
      %c127_i32_113 = arith.constant 127 : i32
      %519 = tpu.dynamic_rotate %499 by %c127_i32_113 dim 1 : vector<16x128xf32>, i32 -> vector<16x128xf32>
      %c95 = arith.constant 95 : index
      %520 = memref.load %arg3[%c95] : memref<98xf32, #tpu.memory_space<smem>>
      %521 = vector.broadcast %520 : f32 to vector<16x128xf32>
      %522 = arith.mulf %521, %519 : vector<16x128xf32>
      %523 = arith.addf %518, %522 : vector<16x128xf32>
      %c126_i32_114 = arith.constant 126 : i32
      %524 = tpu.dynamic_rotate %499 by %c126_i32_114 dim 1 : vector<16x128xf32>, i32 -> vector<16x128xf32>
      %c96 = arith.constant 96 : index
      %525 = memref.load %arg3[%c96] : memref<98xf32, #tpu.memory_space<smem>>
      %526 = vector.broadcast %525 : f32 to vector<16x128xf32>
      %527 = arith.mulf %526, %524 : vector<16x128xf32>
      %528 = arith.addf %523, %527 : vector<16x128xf32>
      %c125_i32_115 = arith.constant 125 : i32
      %529 = tpu.dynamic_rotate %499 by %c125_i32_115 dim 1 : vector<16x128xf32>, i32 -> vector<16x128xf32>
      %c97 = arith.constant 97 : index
      %530 = memref.load %arg3[%c97] : memref<98xf32, #tpu.memory_space<smem>>
      %531 = vector.broadcast %530 : f32 to vector<16x128xf32>
      %532 = arith.mulf %531, %529 : vector<16x128xf32>
      %533 = arith.addf %528, %532 : vector<16x128xf32>
      %534 = arith.addf %284, %248 : vector<16x128xf32>
      %535 = arith.addf %533, %497 : vector<16x128xf32>
      %536 = arith.addf %534, %535 : vector<16x128xf32>
      %537 = vector.extract_strided_slice %536 {offsets = [0, 0], sizes = [16, 16], strides = [1, 1]} : vector<16x128xf32> to vector<16x16xf32>
      %538 = arith.negf %537 : vector<16x16xf32>
      %539 = math.exp %538 : vector<16x16xf32>
      %cst_116 = arith.constant 1.000000e+00 : f32
      %540 = vector.broadcast %cst_116 : f32 to vector<16x16xf32>
      %541 = arith.addf %540, %539 : vector<16x16xf32>
      %542 = arith.divf %540, %541 : vector<16x16xf32>
      %c0_117 = arith.constant 0 : index
      %c0_118 = arith.constant 0 : index
      %c0_119 = arith.constant 0 : index
      %c0_120 = arith.constant 0 : index
      %543 = vector.load %arg4[%c0_117, %c0_118, %c0_119, %c0_120] : memref<1x1x16x16xf32, #tpu.memory_space<vmem>>, vector<1x1x16x16xf32>
      %544 = vector.shape_cast %543 : vector<1x1x16x16xf32> to vector<16x16xf32>
      %545 = vector.shape_cast %542 : vector<16x16xf32> to vector<1x1x16x16xf32>
      tpu.vector_store %arg4[%c0_117, %c0_118, %c0_119, %c0_120], %545 {strides = array<i32>} : memref<1x1x16x16xf32, #tpu.memory_space<vmem>>, vector<1x1x16x16xf32>,
    } else {
    }
    return
  }
  func.func @transform_0(%arg0: i32, %arg1: i32) -> (i32, i32, i32, i32) {
    %c0_i32 = arith.constant 0 : i32
    %c0_i32_0 = arith.constant 0 : i32
    %c0_i32_1 = arith.constant 0 : i32
    return %arg0, %arg1, %c0_i32, %c0_i32_0 : i32, i32, i32, i32
  }
  func.func @transform_1(%arg0: i32, %arg1: i32) -> i32 {
    %c0_i32 = arith.constant 0 : i32
    %c0_i32_0 = arith.constant 0 : i32
    return %c0_i32 : i32
  }
  func.func @transform_2(%arg0: i32, %arg1: i32) -> (i32, i32, i32, i32) {
    %c0_i32 = arith.constant 0 : i32
    %c0_i32_0 = arith.constant 0 : i32
    %c0_i32_1 = arith.constant 0 : i32
    %c0_i32_2 = arith.constant 0 : i32
    return %arg0, %c0_i32, %c0_i32_0, %c0_i32_1 : i32, i32, i32, i32
  }
}

</mosaic_0001>

<llo_original>
// kernel: tpu_custom_call.1
$region0: #{tpu_custom_call.1}
  #allocation0 [shape = 'u32[]', space=smem, size = 0x4, offset = 0x4, fixed_abs, tag = 'smem constant byte address 0x4 - core index']
  #allocation1 [shape = 'u32[144,128]{1,0:T(1,128)}', space=vmem, size = 0x12000, scoped, tag = 'internal scratch']
  #allocation2 [shape = 'f32[16,16]{1,0:T(8,128)}', space=vmem, size = 0x2000, scoped, tag = 'scratch operand']
  #allocation3 [shape = 'f32[16,16]{1,0:T(8,128)}', space=vmem, size = 0x2000, scoped, tag = 'scratch operand']
  %s0 = inlined_call_operand.hbm [shape: f32[2,4,16,16], index: 0, kind: input, shape index: {}]
  %s1 = inlined_call_operand.vmem [shape: f32[98], index: 1, kind: input, shape index: {}]
  %s2 = inlined_call_operand.hbm [shape: f32[2,1,16,16], index: 2, kind: output, shape index: {}]
  %s3 = sld [smem:[#allocation0]]
  $region61: #{tpu_custom_call.1} parent=0
    _
  %s5 = ssub.s32 1, %s3
  %s6 = scalar_select 0, %s5, %s3
  $region1: #{tpu_custom_call.1} parent=0
    #allocation4 [shape = 'u8[65536]{0}', space=vmem, size = 0x10000, scoped, tag = 'input window, operand 0']
    #allocation5 [shape = 's32[2]{0}', space=sflag, size = 0x8, scoped, tag = 'scoped memory for tpu_custom_call.1']
    #allocation6 [shape = 's32[2]{0}', space=sflag, size = 0x8, scoped, tag = 'scoped memory for tpu_custom_call.1']
    #allocation7 [shape = 's32[2]{0}', space=sflag, size = 0x8, scoped, tag = 'scoped memory for tpu_custom_call.1']
    #allocation8 [shape = 'u8[512]{0}', space=smem, size = 0x200, scoped, tag = 'input window, operand 1, single buffered']
    #allocation9 [shape = 'u8[16384]{0}', space=vmem, size = 0x4000, scoped, tag = 'output window, operand 0']
    %7 = vsyncpa [#allocation5], 0
    %s8 = scalar_lea.sflag [#allocation5], 1
    %9 = vsyncpa %s8, 0
    %10 = vsyncpa [#allocation7], 0
    %11 = vsyncpa [#allocation6], 0
    %s12 = scalar_lea.sflag [#allocation6], 1
    %13 = vsyncpa %s12, 0
    loop: start=0, step=1, limit=4
    $region2: #{tpu_custom_call.1} parent=1 // loop_pre_header
      _
    $region3: #{tpu_custom_call.1} parent=1 // loop_header
      %s15 = sphi 0, %s19
      %p16 = scmp.ge.s32.totalorder %s15, 4
      %s22 = sphi 0, %s34
      %s23 = sphi 0, %s30
      %s24 = sphi 0, %s22
      %s25 = sphi 0, %s23
      %s26 = sphi 0, %s24
      %s27 = sphi 0, %s25
      %s39 = sphi 0, %s41
      %s42 = sphi 0, %s39
      %s43 = sphi 0, %s42
      %s59 = sphi 0, %s43
      %s63 = sphi 0, %s63
      %s65 = sphi 0, %s63
      %s66 = sphi 0, %s65
      %s80 = sphi 0, %s66
      %s86 = sphi 0, %s88
      %s89 = sphi 0, %s86
      %s90 = sphi 0, %s89
      %s106 = sphi 0, %s90
    $region4: #{tpu_custom_call.1} parent=1 // loop_header_branch
      %18 = sbr.rel (%p16) target = $region8
    $region5: #{tpu_custom_call.1} parent=1 // loop_body
      %s20 = ssub.s32 %s15, 1
      %s21 = ssub.s32 %s15, 2
      %s28 = sadd.s32 1, %s23
      %p29 = scmp.ge.s32.totalorder %s28, 1
      %s30 = scalar_select %p29, 0, %s28
      %s31 = sadd.s32 1, %s22
      %s32 = scalar_select %p29, %s31, %s22
      %p33 = scmp.ge.s32.totalorder %s32, 2
      %s34 = scalar_select %p33, 0, %s32
      %s35 = ssub.s32 %s22, %s34
      %s36 = ssub.s32 %s23, %s30
      %s37 = sor.u32 %s35, %s36
      %p38 = scmp.eq.s32.totalorder %s37, 0
      %s40 = sadd.s32 %s39, 1
      %s41 = scalar_select %p38, %s39, %s40
      %p44 = pneg %p38
      %p45 = scmp.eq.s32.totalorder %s15, 1
      %p46 = por %p44, %p45
      %p47 = scmp.ne.s32.totalorder %s39, %s42
      %p48 = scmp.eq.s32.totalorder %s15, 0
      %p49 = por %p47, %p48
      %p50 = scmp.ne.s32.totalorder %s39, %s42
      %p51 = scmp.eq.s32.totalorder %s20, 1
      %p52 = por %p50, %p51
      %p53 = scmp.ne.s32.totalorder %s42, %s43
      %p54 = scmp.eq.s32.totalorder %s20, 0
      %p55 = por %p53, %p54
      %p56 = scmp.ne.s32.totalorder %s42, %s43
      %p57 = scmp.eq.s32.totalorder %s21, 1
      %p58 = por %p56, %p57
      %p60 = scmp.ne.s32.totalorder %s43, %s59
      %p61 = scmp.eq.s32.totalorder %s21, 0
      %p62 = por %p60, %p61
      %s64 = sadd.s32 %s63, 1
      %p67 = scmp.eq.s32.totalorder %s15, 1
      %p68 = scmp.ne.s32.totalorder %s63, %s65
      %p69 = scmp.eq.s32.totalorder %s15, 0
      %p70 = por %p68, %p69
      %p71 = scmp.ne.s32.totalorder %s63, %s65
      %p72 = scmp.eq.s32.totalorder %s20, 1
      %p73 = por %p71, %p72
      %p74 = scmp.ne.s32.totalorder %s65, %s66
      %p75 = scmp.eq.s32.totalorder %s20, 0
      %p76 = por %p74, %p75
      %p77 = scmp.ne.s32.totalorder %s65, %s66
      %p78 = scmp.eq.s32.totalorder %s21, 1
      %p79 = por %p77, %p78
      %p81 = scmp.ne.s32.totalorder %s66, %s80
      %p82 = scmp.eq.s32.totalorder %s21, 0
      %p83 = por %p81, %p82
      %s84 = ssub.s32 %s22, %s34
      %p85 = scmp.eq.s32.totalorder %s84, 0
      %s87 = sadd.s32 %s86, 1
      %s88 = scalar_select %p85, %s86, %s87
      %p91 = pneg %p85
      %p92 = scmp.eq.s32.totalorder %s15, 1
      %p93 = por %p91, %p92
      %p94 = scmp.ne.s32.totalorder %s86, %s89
      %p95 = scmp.eq.s32.totalorder %s15, 0
      %p96 = por %p94, %p95
      %p97 = scmp.ne.s32.totalorder %s86, %s89
      %p98 = scmp.eq.s32.totalorder %s20, 1
      %p99 = por %p97, %p98
      %p100 = scmp.ne.s32.totalorder %s89, %s90
      %p101 = scmp.eq.s32.totalorder %s20, 0
      %p102 = por %p100, %p101
      %p103 = scmp.ne.s32.totalorder %s89, %s90
      %p104 = scmp.eq.s32.totalorder %s21, 1
      %p105 = por %p103, %p104
      %p107 = scmp.ne.s32.totalorder %s90, %s106
      %p108 = scmp.eq.s32.totalorder %s21, 0
      %p109 = por %p107, %p108
      %p110 = scmp.le.s32.totalorder 1, %s15
      %p111 = scmp.lt.s32.totalorder %s15, 3
      %p112 = pnand %p110, %p111
      %p113 = pneg %p112
      // Predicated region
      $region9: #{tpu_custom_call.1} parent=5 // pred_check
        _
      $region10: #{tpu_custom_call.1} parent=5 // pred_check_branch
        %115 = sbr.rel (%p112) target = $region12
      $region11: #{tpu_custom_call.1} parent=5 // pred_region
        %s116 = ssub.s32 %s15, 1
        // Predicated region
        $region13: #{tpu_custom_call.1} parent=11 // pred_check
          %p117 = pneg %p76
        $region14: #{tpu_custom_call.1} parent=11 // pred_check_branch
          %119 = sbr.rel (%p117) target = $region16
        $region15: #{tpu_custom_call.1} parent=11 // pred_region
          %s121 = ssub.s32 16, 16
          %122 = vsyncadd [#allocation7], %s121
          %s124 = sshll.u32 %s1, 4
          %s125 = int_to_ptr.vmem [resolvable:$true] %s124
          %127 = dma.vmem_to_smem %s125, 16, [#allocation8], [#allocation7]
        $region16: #{tpu_custom_call.1} parent=11 // pred_fallthru
          _
      $region12: #{tpu_custom_call.1} parent=5 // pred_fallthru
        _
      %p128 = scmp.lt.s32.totalorder %s15, 2
      // Predicated region
      $region17: #{tpu_custom_call.1} parent=5 // pred_check
        %p129 = pneg %p128
      $region18: #{tpu_custom_call.1} parent=5 // pred_check_branch
        %131 = sbr.rel (%p129) target = $region20
      $region19: #{tpu_custom_call.1} parent=5 // pred_region
        // Predicated region
        $region21: #{tpu_custom_call.1} parent=19 // pred_check
          %p132 = pneg %p49
        $region22: #{tpu_custom_call.1} parent=19 // pred_check_branch
          %134 = sbr.rel (%p132) target = $region24
        $region23: #{tpu_custom_call.1} parent=19 // pred_region
          %s135 = sand.u32 %s39, 1
          %s136 = scalar_lea.sflag [#allocation5], %s135
          %s137 = sand.u32 %s39, 1
          %s138 = smul.addr %s137, 64
          %s139 = scalar_lea.vmem [#allocation4], %s138
          %s140 = smul.u32 4, %s23
          %s142 = ssub.s32 1024, 1024
          %143 = vsyncadd %s136, %s142
          %s144 = smul.addr %s140, 2
          %s145 = smul.addr %s22, 8
          %s146 = sadd.s32 %s144, %s145
          %s147 = smul.addr %s146, 128
          %s148 = scalar_lea.hbm %s0, %s147
          %s149 = sshll.u32 %s139, 4
          %s150 = int_to_ptr.vmem [resolvable:$true] %s149
          %155 = dma.hbm_to_vmem [thread:$0]  %s148, 1024, %s150, %s136, 128, 128, 8
        $region24: #{tpu_custom_call.1} parent=19 // pred_fallthru
          _
      $region20: #{tpu_custom_call.1} parent=5 // pred_fallthru
        _
      %p156 = scmp.le.s32.totalorder 1, %s15
      %p157 = scmp.lt.s32.totalorder %s15, 3
      %p158 = pnand %p156, %p157
      %p159 = pneg %p158
      // Predicated region
      $region25: #{tpu_custom_call.1} parent=5 // pred_check
        _
      $region26: #{tpu_custom_call.1} parent=5 // pred_check_branch
        %161 = sbr.rel (%p158) target = $region28
      $region27: #{tpu_custom_call.1} parent=5 // pred_region
        %s162 = ssub.s32 %s15, 1
        %s163 = sand.u32 %s42, 1
        %s164 = scalar_lea.sflag [#allocation5], %s163
        %s165 = sand.u32 %s42, 1
        %s166 = smul.addr %s165, 64
        %s167 = scalar_lea.vmem [#allocation4], %s166
        // Predicated region
        $region29: #{tpu_custom_call.1} parent=27 // pred_check
          %p168 = pneg %p55
        $region30: #{tpu_custom_call.1} parent=27 // pred_check_branch
          %170 = sbr.rel (%p168) target = $region32
        $region31: #{tpu_custom_call.1} parent=27 // pred_region
          %171 = dma.done %s164, 1024
        $region32: #{tpu_custom_call.1} parent=27 // pred_fallthru
          _
        // Predicated region
        $region33: #{tpu_custom_call.1} parent=27 // pred_check
          %p172 = pneg %p76
        $region34: #{tpu_custom_call.1} parent=27 // pred_check_branch
          %174 = sbr.rel (%p172) target = $region36
        $region35: #{tpu_custom_call.1} parent=27 // pred_region
          %175 = dma.done [#allocation7], 16
        $region36: #{tpu_custom_call.1} parent=27 // pred_fallthru
          _
        %176 = sfence
        %s177 = sand.u32 %s42, 1
        %s178 = scalar_lea.sflag [#allocation5], %s177
        %s179 = sand.u32 %s42, 1
        %s180 = smul.addr %s179, 64
        %s181 = scalar_lea.vmem [#allocation4], %s180
        %p182 = pneg %p55
        %p183 = pneg %p52
        %p184 = pneg %p76
        %p185 = pneg %p73
        %p186 = pneg %p102
        %p187 = pneg %p99
        %s188 = sand.u32 %s89, 1
        %s189 = scalar_lea.sflag [#allocation6], %s188
        %s190 = sand.u32 %s89, 1
        %s191 = smul.addr %s190, 16
        %s192 = scalar_lea.vmem [#allocation9], %s191
        %s193 = smul.u32 4, %s25
        %v194 = vld [vmem:[%s167] sm:$0xff]
        %v195 = vld [vmem:[%s167 + $0x8] sm:$0xff]
        %s196 = scalar_lea.vmem %s167, 16 [#allocation4]
        %v197 = vld [vmem:[%s196] sm:$0xff]
        %v198 = vld [vmem:[%s196 + $0x8] sm:$0xff]
        %v199 = vadd.f32 %v194, %v197
        %v200 = vadd.f32 %v195, %v198
        %v201 = vmax.f32 %v194, %v197
        %v202 = vmax.f32 %v195, %v198
        %s203 = scalar_lea.vmem %s167, 32 [#allocation4]
        %v204 = vld [vmem:[%s203] sm:$0xff]
        %v205 = vld [vmem:[%s203 + $0x8] sm:$0xff]
        %v206 = vadd.f32 %v199, %v204
        %v207 = vadd.f32 %v200, %v205
        %v208 = vmax.f32 %v201, %v204
        %v209 = vmax.f32 %v202, %v205
        %s210 = scalar_lea.vmem %s167, 48 [#allocation4]
        %v211 = vld [vmem:[%s210] sm:$0xff]
        %v212 = vld [vmem:[%s210 + $0x8] sm:$0xff]
        %v213 = vadd.f32 %v206, %v211
        %v214 = vadd.f32 %v207, %v212
        %v215 = vmax.f32 %v208, %v211
        %v216 = vmax.f32 %v209, %v212
        %p217 = scmp.eq.s32.totalorder %s25, 0
        // Predicated region
        $region37: #{tpu_custom_call.1} parent=27 // pred_check
          %p218 = pneg %p217
        $region38: #{tpu_custom_call.1} parent=27 // pred_check_branch
          %220 = sbr.rel (%p218) target = $region40
        $region39: #{tpu_custom_call.1} parent=27 // pred_region
          %vm221 = vcmask 130048
          %222 = vst.msk [vmem:[#allocation2] sm:$0xff] %vm221, %v213
          %223 = vst.msk [vmem:[#allocation2 + $0x8] sm:$0xff] %vm221, %v214
          %224 = vst.msk [vmem:[#allocation3] sm:$0xff] %vm221, %v215
          %225 = vst.msk [vmem:[#allocation3 + $0x8] sm:$0xff] %vm221, %v216
        $region40: #{tpu_custom_call.1} parent=27 // pred_fallthru
          _
        %p226 = scmp.gt.s32.totalorder %s25, 0
        // Predicated region
        $region41: #{tpu_custom_call.1} parent=27 // pred_check
          %p227 = pneg %p226
        $region42: #{tpu_custom_call.1} parent=27 // pred_check_branch
          %229 = sbr.rel (%p227) target = $region44
        $region43: #{tpu_custom_call.1} parent=27 // pred_region
          %v230 = vld [vmem:[#allocation2] sm:$0xff]
          %v231 = vld [vmem:[#allocation2 + $0x8] sm:$0xff]
          %v232 = vadd.f32 %v230, %v213
          %v233 = vadd.f32 %v231, %v214
          %vm234 = vcmask 130048
          %235 = vst.msk [vmem:[#allocation2] sm:$0xff] %vm234, %v232
          %236 = vst.msk [vmem:[#allocation2 + $0x8] sm:$0xff] %vm234, %v233
          %v237 = vld [vmem:[#allocation3] sm:$0xff]
          %v238 = vld [vmem:[#allocation3 + $0x8] sm:$0xff]
          %v239 = vmax.f32 %v237, %v215
          %v240 = vmax.f32 %v238, %v216
          %241 = vst.msk [vmem:[#allocation3] sm:$0xff] %vm234, %v239
          %242 = vst.msk [vmem:[#allocation3 + $0x8] sm:$0xff] %vm234, %v240
        $region44: #{tpu_custom_call.1} parent=27 // pred_fallthru
          _
        // Predicated region
        $region45: #{tpu_custom_call.1} parent=27 // pred_check
          %p243 = pneg %p217
        $region46: #{tpu_custom_call.1} parent=27 // pred_check_branch
          %245 = sbr.rel (%p243) target = $region48
        $region47: #{tpu_custom_call.1} parent=27 // pred_region
          %v246 = vld [vmem:[#allocation2] sm:$0xff]
          %v247 = vld [vmem:[#allocation2 + $0x8] sm:$0xff]
          %vm248 = vcmask 130048
          %v249 = vsel %vm248, %v246, 0.0
          %v250 = vsel %vm248, %v247, 0.0
          %v251 = vld [vmem:[#allocation3] sm:$0xff]
          %v252 = vld [vmem:[#allocation3 + $0x8] sm:$0xff]
          %v253 = vsel %vm248, %v251, 0.0
          %v254 = vsel %vm248, %v252, 0.0
          %v255 = vrot.slane %v249, 5
          %v256 = vrot.slane %v250, 5
          %v257 = vlaneseq
          %v258 = vshrl.u32 %v257, 7
          %vm259 = vcmp.lt.s32.totalorder %v258, 3
          %v260 = vsel %vm259, %v255, %v256
          %v261 = vsel %vm259, 0.0, %v255
          %262 = vrot.lane.b32.xlu0 %v261, 3
          %v263 = vpop.permute.xlu0 %262
          %264 = vrot.lane.b32.xlu0 %v260, 3
          %v265 = vpop.permute.xlu0 %264
          %s266 = sld [smem:[#allocation8]]
          %v267 = vstv %s266
          %v268 = vmul.f32 %v267, %v263
          %v269 = vmul.f32 %v267, %v265
          %270 = vrot.lane.b32.xlu0 %v261, 2
          %v271 = vpop.permute.xlu0 %270
          %272 = vrot.lane.b32.xlu0 %v260, 2
          %v273 = vpop.permute.xlu0 %272
          %s274 = sld [smem:[#allocation8 + $0x1]]
          %v275 = vstv %s274
          %v276 = vmul.f32 %v275, %v271
          %v277 = vmul.f32 %v275, %v273
          %v278 = vadd.f32 %v268, %v276
          %v279 = vadd.f32 %v269, %v277
          %280 = vrot.lane.b32.xlu0 %v261, 1
          %v281 = vpop.permute.xlu0 %280
          %282 = vrot.lane.b32.xlu0 %v260, 1
          %v283 = vpop.permute.xlu0 %282
          %s284 = sld [smem:[#allocation8 + $0x2]]
          %v285 = vstv %s284
          %v286 = vmul.f32 %v285, %v281
          %v287 = vmul.f32 %v285, %v283
          %v288 = vadd.f32 %v278, %v286
          %v289 = vadd.f32 %v279, %v287
          %s290 = sld [smem:[#allocation8 + $0x3]]
          %v291 = vstv %s290
          %v292 = vmul.f32 %v291, %v261
          %v293 = vmul.f32 %v291, %v260
          %v294 = vadd.f32 %v288, %v292
          %v295 = vadd.f32 %v289, %v293
          %296 = vrot.lane.b32.xlu0 %v261, 127
          %v297 = vpop.permute.xlu0 %296
          %298 = vrot.lane.b32.xlu0 %v260, 127
          %v299 = vpop.permute.xlu0 %298
          %s300 = sld [smem:[#allocation8 + $0x4]]
          %v301 = vstv %s300
          %v302 = vmul.f32 %v301, %v297
          %v303 = vmul.f32 %v301, %v299
          %v304 = vadd.f32 %v294, %v302
          %v305 = vadd.f32 %v295, %v303
          %306 = vrot.lane.b32.xlu0 %v261, 126
          %v307 = vpop.permute.xlu0 %306
          %308 = vrot.lane.b32.xlu0 %v260, 126
          %v309 = vpop.permute.xlu0 %308
          %s310 = sld [smem:[#allocation8 + $0x5]]
          %v311 = vstv %s310
          %v312 = vmul.f32 %v311, %v307
          %v313 = vmul.f32 %v311, %v309
          %v314 = vadd.f32 %v304, %v312
          %v315 = vadd.f32 %v305, %v313
          %316 = vrot.lane.b32.xlu0 %v261, 125
          %v317 = vpop.permute.xlu0 %316
          %318 = vrot.lane.b32.xlu0 %v260, 125
          %v319 = vpop.permute.xlu0 %318
          %s320 = sld [smem:[#allocation8 + $0x6]]
          %v321 = vstv %s320
          %v322 = vmul.f32 %v321, %v317
          %v323 = vmul.f32 %v321, %v319
          %v324 = vadd.f32 %v314, %v322
          %v325 = vadd.f32 %v315, %v323
          %v326 = vrot.slane %v249, 6
          %v327 = vrot.slane %v250, 6
          %vm328 = vcmp.lt.s32.totalorder %v258, 2
          %v329 = vsel %vm328, %v326, %v327
          %v330 = vsel %vm328, 0.0, %v326
          %331 = vrot.lane.b32.xlu0 %v330, 3
          %v332 = vpop.permute.xlu0 %331
          %333 = vrot.lane.b32.xlu0 %v329, 3
          %v334 = vpop.permute.xlu0 %333
          %s335 = sld [smem:[#allocation8 + $0x7]]
          %v336 = vstv %s335
          %v337 = vmul.f32 %v336, %v332
          %v338 = vmul.f32 %v336, %v334
          %339 = vrot.lane.b32.xlu0 %v330, 2
          %v340 = vpop.permute.xlu0 %339
          %341 = vrot.lane.b32.xlu0 %v329, 2
          %v342 = vpop.permute.xlu0 %341
          %s343 = sld [smem:[#allocation8 + $0x8]]
          %v344 = vstv %s343
          %v345 = vmul.f32 %v344, %v340
          %v346 = vmul.f32 %v344, %v342
          %v347 = vadd.f32 %v337, %v345
          %v348 = vadd.f32 %v338, %v346
          %349 = vrot.lane.b32.xlu0 %v330, 1
          %v350 = vpop.permute.xlu0 %349
          %351 = vrot.lane.b32.xlu0 %v329, 1
          %v352 = vpop.permute.xlu0 %351
          %s353 = sld [smem:[#allocation8 + $0x9]]
          %v354 = vstv %s353
          %v355 = vmul.f32 %v354, %v350
          %v356 = vmul.f32 %v354, %v352
          %v357 = vadd.f32 %v347, %v355
          %v358 = vadd.f32 %v348, %v356
          %s359 = sld [smem:[#allocation8 + $0xa]]
          %v360 = vstv %s359
          %v361 = vmul.f32 %v360, %v330
          %v362 = vmul.f32 %v360, %v329
          %v363 = vadd.f32 %v357, %v361
          %v364 = vadd.f32 %v358, %v362
          %365 = vrot.lane.b32.xlu0 %v330, 127
          %v366 = vpop.permute.xlu0 %365
          %367 = vrot.lane.b32.xlu0 %v329, 127
          %v368 = vpop.permute.xlu0 %367
          %s369 = sld [smem:[#allocation8 + $0xb]]
          %v370 = vstv %s369
          %v371 = vmul.f32 %v370, %v366
          %v372 = vmul.f32 %v370, %v368
          %v373 = vadd.f32 %v363, %v371
          %v374 = vadd.f32 %v364, %v372
          %375 = vrot.lane.b32.xlu0 %v330, 126
          %v376 = vpop.permute.xlu0 %375
          %377 = vrot.lane.b32.xlu0 %v329, 126
          %v378 = vpop.permute.xlu0 %377
          %s379 = sld [smem:[#allocation8 + $0xc]]
          %v380 = vstv %s379
          %v381 = vmul.f32 %v380, %v376
          %v382 = vmul.f32 %v380, %v378
          %v383 = vadd.f32 %v373, %v381
          %v384 = vadd.f32 %v374, %v382
          %385 = vrot.lane.b32.xlu0 %v330, 125
          %v386 = vpop.permute.xlu0 %385
          %387 = vrot.lane.b32.xlu0 %v329, 125
          %v388 = vpop.permute.xlu0 %387
          %s389 = sld [smem:[#allocation8 + $0xd]]
          %v390 = vstv %s389
          %v391 = vmul.f32 %v390, %v386
          %v392 = vmul.f32 %v390, %v388
          %v393 = vadd.f32 %v383, %v391
          %v394 = vadd.f32 %v384, %v392
          %v395 = vrot.slane %v249, 7
          %v396 = vrot.slane %v250, 7
          %vm397 = vcmp.lt.s32.totalorder %v258, 1
          %v398 = vsel %vm397, %v395, %v396
          %v399 = vsel %vm397, 0.0, %v395
          %400 = vrot.lane.b32.xlu0 %v399, 3
          %v401 = vpop.permute.xlu0 %400
          %402 = vrot.lane.b32.xlu0 %v398, 3
          %v403 = vpop.permute.xlu0 %402
          %s404 = sld [smem:[#allocation8 + $0xe]]
          %v405 = vstv %s404
          %v406 = vmul.f32 %v405, %v401
          %v407 = vmul.f32 %v405, %v403
          %v408 = vadd.f32 %v324, %v406
          %v409 = vadd.f32 %v325, %v407
          %410 = vrot.lane.b32.xlu0 %v399, 2
          %v411 = vpop.permute.xlu0 %410
          %412 = vrot.lane.b32.xlu0 %v398, 2
          %v413 = vpop.permute.xlu0 %412
          %s414 = sld [smem:[#allocation8 + $0xf]]
          %v415 = vstv %s414
          %v416 = vmul.f32 %v415, %v411
          %v417 = vmul.f32 %v415, %v413
          %v418 = vadd.f32 %v408, %v416
          %v419 = vadd.f32 %v409, %v417
          %420 = vrot.lane.b32.xlu0 %v399, 1
          %v421 = vpop.permute.xlu0 %420
          %422 = vrot.lane.b32.xlu0 %v398, 1
          %v423 = vpop.permute.xlu0 %422
          %s424 = sld [smem:[#allocation8 + $0x10]]
          %v425 = vstv %s424
          %v426 = vmul.f32 %v425, %v421
          %v427 = vmul.f32 %v425, %v423
          %v428 = vadd.f32 %v418, %v426
          %v429 = vadd.f32 %v419, %v427
          %s430 = sld [smem:[#allocation8 + $0x11]]
          %v431 = vstv %s430
          %v432 = vmul.f32 %v431, %v399
          %v433 = vmul.f32 %v431, %v398
          %v434 = vadd.f32 %v428, %v432
          %v435 = vadd.f32 %v429, %v433
          %436 = vrot.lane.b32.xlu0 %v399, 127
          %v437 = vpop.permute.xlu0 %436
          %438 = vrot.lane.b32.xlu0 %v398, 127
          %v439 = vpop.permute.xlu0 %438
          %s440 = sld [smem:[#allocation8 + $0x12]]
          %v441 = vstv %s440
          %v442 = vmul.f32 %v441, %v437
          %v443 = vmul.f32 %v441, %v439
          %v444 = vadd.f32 %v434, %v442
          %v445 = vadd.f32 %v435, %v443
          %446 = vrot.lane.b32.xlu0 %v399, 126
          %v447 = vpop.permute.xlu0 %446
          %448 = vrot.lane.b32.xlu0 %v398, 126
          %v449 = vpop.permute.xlu0 %448
          %s450 = sld [smem:[#allocation8 + $0x13]]
          %v451 = vstv %s450
          %v452 = vmul.f32 %v451, %v447
          %v453 = vmul.f32 %v451, %v449
          %v454 = vadd.f32 %v444, %v452
          %v455 = vadd.f32 %v445, %v453
          %456 = vrot.lane.b32.xlu0 %v399, 125
          %v457 = vpop.permute.xlu0 %456
          %458 = vrot.lane.b32.xlu0 %v398, 125
          %v459 = vpop.permute.xlu0 %458
          %s460 = sld [smem:[#allocation8 + $0x14]]
          %v461 = vstv %s460
          %v462 = vmul.f32 %v461, %v457
          %v463 = vmul.f32 %v461, %v459
          %v464 = vadd.f32 %v454, %v462
          %v465 = vadd.f32 %v455, %v463
          %466 = vrot.lane.b32.xlu0 %v249, 3
          %v467 = vpop.permute.xlu0 %466
          %468 = vrot.lane.b32.xlu0 %v250, 3
          %v469 = vpop.permute.xlu0 %468
          %s470 = sld [smem:[#allocation8 + $0x15]]
          %v471 = vstv %s470
          %v472 = vmul.f32 %v471, %v467
          %v473 = vmul.f32 %v471, %v469
          %v474 = vadd.f32 %v393, %v472
          %v475 = vadd.f32 %v394, %v473
          %476 = vrot.lane.b32.xlu0 %v249, 2
          %v477 = vpop.permute.xlu0 %476
          %478 = vrot.lane.b32.xlu0 %v250, 2
          %v479 = vpop.permute.xlu0 %478
          %s480 = sld [smem:[#allocation8 + $0x16]]
          %v481 = vstv %s480
          %v482 = vmul.f32 %v481, %v477
          %v483 = vmul.f32 %v481, %v479
          %v484 = vadd.f32 %v474, %v482
          %v485 = vadd.f32 %v475, %v483
          %486 = vrot.lane.b32.xlu0 %v249, 1
          %v487 = vpop.permute.xlu0 %486
          %488 = vrot.lane.b32.xlu0 %v250, 1
          %v489 = vpop.permute.xlu0 %488
          %s490 = sld [smem:[#allocation8 + $0x17]]
          %v491 = vstv %s490
          %v492 = vmul.f32 %v491, %v487
          %v493 = vmul.f32 %v491, %v489
          %v494 = vadd.f32 %v484, %v492
          %v495 = vadd.f32 %v485, %v493
          %s496 = sld [smem:[#allocation8 + $0x18]]
          %v497 = vstv %s496
          %v498 = vmul.f32 %v497, %v249
          %v499 = vmul.f32 %v497, %v250
          %v500 = vadd.f32 %v494, %v498
          %v501 = vadd.f32 %v495, %v499
          %502 = vrot.lane.b32.xlu0 %v249, 127
          %v503 = vpop.permute.xlu0 %502
          %504 = vrot.lane.b32.xlu0 %v250, 127
          %v505 = vpop.permute.xlu0 %504
          %s506 = sld [smem:[#allocation8 + $0x19]]
          %v507 = vstv %s506
          %v508 = vmul.f32 %v507, %v503
          %v509 = vmul.f32 %v507, %v505
          %v510 = vadd.f32 %v500, %v508
          %v511 = vadd.f32 %v501, %v509
          %512 = vrot.lane.b32.xlu0 %v249, 126
          %v513 = vpop.permute.xlu0 %512
          %514 = vrot.lane.b32.xlu0 %v250, 126
          %v515 = vpop.permute.xlu0 %514
          %s516 = sld [smem:[#allocation8 + $0x1a]]
          %v517 = vstv %s516
          %v518 = vmul.f32 %v517, %v513
          %v519 = vmul.f32 %v517, %v515
          %v520 = vadd.f32 %v510, %v518
          %v521 = vadd.f32 %v511, %v519
          %522 = vrot.lane.b32.xlu0 %v249, 125
          %v523 = vpop.permute.xlu0 %522
          %524 = vrot.lane.b32.xlu0 %v250, 125
          %v525 = vpop.permute.xlu0 %524
          %s526 = sld [smem:[#allocation8 + $0x1b]]
          %v527 = vstv %s526
          %v528 = vmul.f32 %v527, %v523
          %v529 = vmul.f32 %v527, %v525
          %v530 = vadd.f32 %v520, %v528
          %v531 = vadd.f32 %v521, %v529
          %v532 = vrot.slane %v249, 1
          %v533 = vrot.slane %v250, 1
          %vm534 = vcmp.lt.s32.totalorder %v258, 7
          %v535 = vsel %vm534, %v533, 0.0
          %v536 = vsel %vm534, %v532, %v533
          %537 = vrot.lane.b32.xlu0 %v536, 3
          %v538 = vpop.permute.xlu0 %537
          %539 = vrot.lane.b32.xlu0 %v535, 3
          %v540 = vpop.permute.xlu0 %539
          %s541 = sld [smem:[#allocation8 + $0x1c]]
          %v542 = vstv %s541
          %v543 = vmul.f32 %v542, %v538
          %v544 = vmul.f32 %v542, %v540
          %v545 = vadd.f32 %v464, %v543
          %v546 = vadd.f32 %v465, %v544
          %547 = vrot.lane.b32.xlu0 %v536, 2
          %v548 = vpop.permute.xlu0 %547
          %549 = vrot.lane.b32.xlu0 %v535, 2
          %v550 = vpop.permute.xlu0 %549
          %s551 = sld [smem:[#allocation8 + $0x1d]]
          %v552 = vstv %s551
          %v553 = vmul.f32 %v552, %v548
          %v554 = vmul.f32 %v552, %v550
          %v555 = vadd.f32 %v545, %v553
          %v556 = vadd.f32 %v546, %v554
          %557 = vrot.lane.b32.xlu0 %v536, 1
          %v558 = vpop.permute.xlu0 %557
          %559 = vrot.lane.b32.xlu0 %v535, 1
          %v560 = vpop.permute.xlu0 %559
          %s561 = sld [smem:[#allocation8 + $0x1e]]
          %v562 = vstv %s561
          %v563 = vmul.f32 %v562, %v558
          %v564 = vmul.f32 %v562, %v560
          %v565 = vadd.f32 %v555, %v563
          %v566 = vadd.f32 %v556, %v564
          %s567 = sld [smem:[#allocation8 + $0x1f]]
          %v568 = vstv %s567
          %v569 = vmul.f32 %v568, %v536
          %v570 = vmul.f32 %v568, %v535
          %v571 = vadd.f32 %v565, %v569
          %v572 = vadd.f32 %v566, %v570
          %573 = vrot.lane.b32.xlu0 %v536, 127
          %v574 = vpop.permute.xlu0 %573
          %575 = vrot.lane.b32.xlu0 %v535, 127
          %v576 = vpop.permute.xlu0 %575
          %s577 = sld [smem:[#allocation8 + $0x20]]
          %v578 = vstv %s577
          %v579 = vmul.f32 %v578, %v574
          %v580 = vmul.f32 %v578, %v576
          %v581 = vadd.f32 %v571, %v579
          %v582 = vadd.f32 %v572, %v580
          %583 = vrot.lane.b32.xlu0 %v536, 126
          %v584 = vpop.permute.xlu0 %583
          %585 = vrot.lane.b32.xlu0 %v535, 126
          %v586 = vpop.permute.xlu0 %585
          %s587 = sld [smem:[#allocation8 + $0x21]]
          %v588 = vstv %s587
          %v589 = vmul.f32 %v588, %v584
          %v590 = vmul.f32 %v588, %v586
          %v591 = vadd.f32 %v581, %v589
          %v592 = vadd.f32 %v582, %v590
          %593 = vrot.lane.b32.xlu0 %v536, 125
          %v594 = vpop.permute.xlu0 %593
          %595 = vrot.lane.b32.xlu0 %v535, 125
          %v596 = vpop.permute.xlu0 %595
          %s597 = sld [smem:[#allocation8 + $0x22]]
          %v598 = vstv %s597
          %v599 = vmul.f32 %v598, %v594
          %v600 = vmul.f32 %v598, %v596
          %v601 = vadd.f32 %v591, %v599
          %v602 = vadd.f32 %v592, %v600
          %v603 = vrot.slane %v249, 2
          %v604 = vrot.slane %v250, 2
          %vm605 = vcmp.lt.s32.totalorder %v258, 6
          %v606 = vsel %vm605, %v604, 0.0
          %v607 = vsel %vm605, %v603, %v604
          %608 = vrot.lane.b32.xlu0 %v607, 3
          %v609 = vpop.permute.xlu0 %608
          %610 = vrot.lane.b32.xlu0 %v606, 3
          %v611 = vpop.permute.xlu0 %610
          %s612 = sld [smem:[#allocation8 + $0x23]]
          %v613 = vstv %s612
          %v614 = vmul.f32 %v613, %v609
          %v615 = vmul.f32 %v613, %v611
          %v616 = vadd.f32 %v530, %v614
          %v617 = vadd.f32 %v531, %v615
          %618 = vrot.lane.b32.xlu0 %v607, 2
          %v619 = vpop.permute.xlu0 %618
          %620 = vrot.lane.b32.xlu0 %v606, 2
          %v621 = vpop.permute.xlu0 %620
          %s622 = sld [smem:[#allocation8 + $0x24]]
          %v623 = vstv %s622
          %v624 = vmul.f32 %v623, %v619
          %v625 = vmul.f32 %v623, %v621
          %v626 = vadd.f32 %v616, %v624
          %v627 = vadd.f32 %v617, %v625
          %628 = vrot.lane.b32.xlu0 %v607, 1
          %v629 = vpop.permute.xlu0 %628
          %630 = vrot.lane.b32.xlu0 %v606, 1
          %v631 = vpop.permute.xlu0 %630
          %s632 = sld [smem:[#allocation8 + $0x25]]
          %v633 = vstv %s632
          %v634 = vmul.f32 %v633, %v629
          %v635 = vmul.f32 %v633, %v631
          %v636 = vadd.f32 %v626, %v634
          %v637 = vadd.f32 %v627, %v635
          %s638 = sld [smem:[#allocation8 + $0x26]]
          %v639 = vstv %s638
          %v640 = vmul.f32 %v639, %v607
          %v641 = vmul.f32 %v639, %v606
          %v642 = vadd.f32 %v636, %v640
          %v643 = vadd.f32 %v637, %v641
          %644 = vrot.lane.b32.xlu0 %v607, 127
          %v645 = vpop.permute.xlu0 %644
          %646 = vrot.lane.b32.xlu0 %v606, 127
          %v647 = vpop.permute.xlu0 %646
          %s648 = sld [smem:[#allocation8 + $0x27]]
          %v649 = vstv %s648
          %v650 = vmul.f32 %v649, %v645
          %v651 = vmul.f32 %v649, %v647
          %v652 = vadd.f32 %v642, %v650
          %v653 = vadd.f32 %v643, %v651
          %654 = vrot.lane.b32.xlu0 %v607, 126
          %v655 = vpop.permute.xlu0 %654
          %656 = vrot.lane.b32.xlu0 %v606, 126
          %v657 = vpop.permute.xlu0 %656
          %s658 = sld [smem:[#allocation8 + $0x28]]
          %v659 = vstv %s658
          %v660 = vmul.f32 %v659, %v655
          %v661 = vmul.f32 %v659, %v657
          %v662 = vadd.f32 %v652, %v660
          %v663 = vadd.f32 %v653, %v661
          %664 = vrot.lane.b32.xlu0 %v607, 125
          %v665 = vpop.permute.xlu0 %664
          %666 = vrot.lane.b32.xlu0 %v606, 125
          %v667 = vpop.permute.xlu0 %666
          %s668 = sld [smem:[#allocation8 + $0x29]]
          %v669 = vstv %s668
          %v670 = vmul.f32 %v669, %v665
          %v671 = vmul.f32 %v669, %v667
          %v672 = vadd.f32 %v662, %v670
          %v673 = vadd.f32 %v663, %v671
          %v674 = vrot.slane %v249, 3
          %v675 = vrot.slane %v250, 3
          %vm676 = vcmp.lt.s32.totalorder %v258, 5
          %v677 = vsel %vm676, %v675, 0.0
          %v678 = vsel %vm676, %v674, %v675
          %679 = vrot.lane.b32.xlu0 %v678, 3
          %v680 = vpop.permute.xlu0 %679
          %681 = vrot.lane.b32.xlu0 %v677, 3
          %v682 = vpop.permute.xlu0 %681
          %s683 = sld [smem:[#allocation8 + $0x2a]]
          %v684 = vstv %s683
          %v685 = vmul.f32 %v684, %v680
          %v686 = vmul.f32 %v684, %v682
          %v687 = vadd.f32 %v601, %v685
          %v688 = vadd.f32 %v602, %v686
          %689 = vrot.lane.b32.xlu0 %v678, 2
          %v690 = vpop.permute.xlu0 %689
          %691 = vrot.lane.b32.xlu0 %v677, 2
          %v692 = vpop.permute.xlu0 %691
          %s693 = sld [smem:[#allocation8 + $0x2b]]
          %v694 = vstv %s693
          %v695 = vmul.f32 %v694, %v690
          %v696 = vmul.f32 %v694, %v692
          %v697 = vadd.f32 %v687, %v695
          %v698 = vadd.f32 %v688, %v696
          %699 = vrot.lane.b32.xlu0 %v678, 1
          %v700 = vpop.permute.xlu0 %699
          %701 = vrot.lane.b32.xlu0 %v677, 1
          %v702 = vpop.permute.xlu0 %701
          %s703 = sld [smem:[#allocation8 + $0x2c]]
          %v704 = vstv %s703
          %v705 = vmul.f32 %v704, %v700
          %v706 = vmul.f32 %v704, %v702
          %v707 = vadd.f32 %v697, %v705
          %v708 = vadd.f32 %v698, %v706
          %s709 = sld [smem:[#allocation8 + $0x2d]]
          %v710 = vstv %s709
          %v711 = vmul.f32 %v710, %v678
          %v712 = vmul.f32 %v710, %v677
          %v713 = vadd.f32 %v707, %v711
          %v714 = vadd.f32 %v708, %v712
          %715 = vrot.lane.b32.xlu0 %v678, 127
          %v716 = vpop.permute.xlu0 %715
          %717 = vrot.lane.b32.xlu0 %v677, 127
          %v718 = vpop.permute.xlu0 %717
          %s719 = sld [smem:[#allocation8 + $0x2e]]
          %v720 = vstv %s719
          %v721 = vmul.f32 %v720, %v716
          %v722 = vmul.f32 %v720, %v718
          %v723 = vadd.f32 %v713, %v721
          %v724 = vadd.f32 %v714, %v722
          %725 = vrot.lane.b32.xlu0 %v678, 126
          %v726 = vpop.permute.xlu0 %725
          %727 = vrot.lane.b32.xlu0 %v677, 126
          %v728 = vpop.permute.xlu0 %727
          %s729 = sld [smem:[#allocation8 + $0x2f]]
          %v730 = vstv %s729
          %v731 = vmul.f32 %v730, %v726
          %v732 = vmul.f32 %v730, %v728
          %v733 = vadd.f32 %v723, %v731
          %v734 = vadd.f32 %v724, %v732
          %735 = vrot.lane.b32.xlu0 %v678, 125
          %v736 = vpop.permute.xlu0 %735
          %737 = vrot.lane.b32.xlu0 %v677, 125
          %v738 = vpop.permute.xlu0 %737
          %s739 = sld [smem:[#allocation8 + $0x30]]
          %v740 = vstv %s739
          %v741 = vmul.f32 %v740, %v736
          %v742 = vmul.f32 %v740, %v738
          %v743 = vadd.f32 %v733, %v741
          %v744 = vadd.f32 %v734, %v742
          %v745 = vrot.slane %v253, 5
          %v746 = vrot.slane %v254, 5
          %v747 = vsel %vm259, %v745, %v746
          %v748 = vsel %vm259, 0.0, %v745
          %749 = vrot.lane.b32.xlu0 %v748, 3
          %v750 = vpop.permute.xlu0 %749
          %751 = vrot.lane.b32.xlu0 %v747, 3
          %v752 = vpop.permute.xlu0 %751
          %s753 = sld [smem:[#allocation8 + $0x31]]
          %v754 = vstv %s753
          %v755 = vmul.f32 %v754, %v750
          %v756 = vmul.f32 %v754, %v752
          %757 = vrot.lane.b32.xlu0 %v748, 2
          %v758 = vpop.permute.xlu0 %757
          %759 = vrot.lane.b32.xlu0 %v747, 2
          %v760 = vpop.permute.xlu0 %759
          %s761 = sld [smem:[#allocation8 + $0x32]]
          %v762 = vstv %s761
          %v763 = vmul.f32 %v762, %v758
          %v764 = vmul.f32 %v762, %v760
          %v765 = vadd.f32 %v755, %v763
          %v766 = vadd.f32 %v756, %v764
          %767 = vrot.lane.b32.xlu0 %v748, 1
          %v768 = vpop.permute.xlu0 %767
          %769 = vrot.lane.b32.xlu0 %v747, 1
          %v770 = vpop.permute.xlu0 %769
          %s771 = sld [smem:[#allocation8 + $0x33]]
          %v772 = vstv %s771
          %v773 = vmul.f32 %v772, %v768
          %v774 = vmul.f32 %v772, %v770
          %v775 = vadd.f32 %v765, %v773
          %v776 = vadd.f32 %v766, %v774
          %s777 = sld [smem:[#allocation8 + $0x34]]
          %v778 = vstv %s777
          %v779 = vmul.f32 %v778, %v748
          %v780 = vmul.f32 %v778, %v747
          %v781 = vadd.f32 %v775, %v779
          %v782 = vadd.f32 %v776, %v780
          %783 = vrot.lane.b32.xlu0 %v748, 127
          %v784 = vpop.permute.xlu0 %783
          %785 = vrot.lane.b32.xlu0 %v747, 127
          %v786 = vpop.permute.xlu0 %785
          %s787 = sld [smem:[#allocation8 + $0x35]]
          %v788 = vstv %s787
          %v789 = vmul.f32 %v788, %v784
          %v790 = vmul.f32 %v788, %v786
          %v791 = vadd.f32 %v781, %v789
          %v792 = vadd.f32 %v782, %v790
          %793 = vrot.lane.b32.xlu0 %v748, 126
          %v794 = vpop.permute.xlu0 %793
          %795 = vrot.lane.b32.xlu0 %v747, 126
          %v796 = vpop.permute.xlu0 %795
          %s797 = sld [smem:[#allocation8 + $0x36]]
          %v798 = vstv %s797
          %v799 = vmul.f32 %v798, %v794
          %v800 = vmul.f32 %v798, %v796
          %v801 = vadd.f32 %v791, %v799
          %v802 = vadd.f32 %v792, %v800
          %803 = vrot.lane.b32.xlu0 %v748, 125
          %v804 = vpop.permute.xlu0 %803
          %805 = vrot.lane.b32.xlu0 %v747, 125
          %v806 = vpop.permute.xlu0 %805
          %s807 = sld [smem:[#allocation8 + $0x37]]
          %v808 = vstv %s807
          %v809 = vmul.f32 %v808, %v804
          %v810 = vmul.f32 %v808, %v806
          %v811 = vadd.f32 %v801, %v809
          %v812 = vadd.f32 %v802, %v810
          %v813 = vrot.slane %v253, 6
          %v814 = vrot.slane %v254, 6
          %v815 = vsel %vm328, %v813, %v814
          %v816 = vsel %vm328, 0.0, %v813
          %817 = vrot.lane.b32.xlu0 %v816, 3
          %v818 = vpop.permute.xlu0 %817
          %819 = vrot.lane.b32.xlu0 %v815, 3
          %v820 = vpop.permute.xlu0 %819
          %s821 = sld [smem:[#allocation8 + $0x38]]
          %v822 = vstv %s821
          %v823 = vmul.f32 %v822, %v818
          %v824 = vmul.f32 %v822, %v820
          %825 = vrot.lane.b32.xlu0 %v816, 2
          %v826 = vpop.permute.xlu0 %825
          %827 = vrot.lane.b32.xlu0 %v815, 2
          %v828 = vpop.permute.xlu0 %827
          %s829 = sld [smem:[#allocation8 + $0x39]]
          %v830 = vstv %s829
          %v831 = vmul.f32 %v830, %v826
          %v832 = vmul.f32 %v830, %v828
          %v833 = vadd.f32 %v823, %v831
          %v834 = vadd.f32 %v824, %v832
          %835 = vrot.lane.b32.xlu0 %v816, 1
          %v836 = vpop.permute.xlu0 %835
          %837 = vrot.lane.b32.xlu0 %v815, 1
          %v838 = vpop.permute.xlu0 %837
          %s839 = sld [smem:[#allocation8 + $0x3a]]
          %v840 = vstv %s839
          %v841 = vmul.f32 %v840, %v836
          %v842 = vmul.f32 %v840, %v838
          %v843 = vadd.f32 %v833, %v841
          %v844 = vadd.f32 %v834, %v842
          %s845 = sld [smem:[#allocation8 + $0x3b]]
          %v846 = vstv %s845
          %v847 = vmul.f32 %v846, %v816
          %v848 = vmul.f32 %v846, %v815
          %v849 = vadd.f32 %v843, %v847
          %v850 = vadd.f32 %v844, %v848
          %851 = vrot.lane.b32.xlu0 %v816, 127
          %v852 = vpop.permute.xlu0 %851
          %853 = vrot.lane.b32.xlu0 %v815, 127
          %v854 = vpop.permute.xlu0 %853
          %s855 = sld [smem:[#allocation8 + $0x3c]]
          %v856 = vstv %s855
          %v857 = vmul.f32 %v856, %v852
          %v858 = vmul.f32 %v856, %v854
          %v859 = vadd.f32 %v849, %v857
          %v860 = vadd.f32 %v850, %v858
          %861 = vrot.lane.b32.xlu0 %v816, 126
          %v862 = vpop.permute.xlu0 %861
          %863 = vrot.lane.b32.xlu0 %v815, 126
          %v864 = vpop.permute.xlu0 %863
          %s865 = sld [smem:[#allocation8 + $0x3d]]
          %v866 = vstv %s865
          %v867 = vmul.f32 %v866, %v862
          %v868 = vmul.f32 %v866, %v864
          %v869 = vadd.f32 %v859, %v867
          %v870 = vadd.f32 %v860, %v868
          %871 = vrot.lane.b32.xlu0 %v816, 125
          %v872 = vpop.permute.xlu0 %871
          %873 = vrot.lane.b32.xlu0 %v815, 125
          %v874 = vpop.permute.xlu0 %873
          %s875 = sld [smem:[#allocation8 + $0x3e]]
          %v876 = vstv %s875
          %v877 = vmul.f32 %v876, %v872
          %v878 = vmul.f32 %v876, %v874
          %v879 = vadd.f32 %v869, %v877
          %v880 = vadd.f32 %v870, %v878
          %v881 = vrot.slane %v253, 7
          %v882 = vrot.slane %v254, 7
          %v883 = vsel %vm397, %v881, %v882
          %v884 = vsel %vm397, 0.0, %v881
          %885 = vrot.lane.b32.xlu0 %v884, 3
          %v886 = vpop.permute.xlu0 %885
          %887 = vrot.lane.b32.xlu0 %v883, 3
          %v888 = vpop.permute.xlu0 %887
          %s889 = sld [smem:[#allocation8 + $0x3f]]
          %v890 = vstv %s889
          %v891 = vmul.f32 %v890, %v886
          %v892 = vmul.f32 %v890, %v888
          %v893 = vadd.f32 %v811, %v891
          %v894 = vadd.f32 %v812, %v892
          %895 = vrot.lane.b32.xlu0 %v884, 2
          %v896 = vpop.permute.xlu0 %895
          %897 = vrot.lane.b32.xlu0 %v883, 2
          %v898 = vpop.permute.xlu0 %897
          %s899 = sld [smem:[#allocation8 + $0x40]]
          %v900 = vstv %s899
          %v901 = vmul.f32 %v900, %v896
          %v902 = vmul.f32 %v900, %v898
          %v903 = vadd.f32 %v893, %v901
          %v904 = vadd.f32 %v894, %v902
          %905 = vrot.lane.b32.xlu0 %v884, 1
          %v906 = vpop.permute.xlu0 %905
          %907 = vrot.lane.b32.xlu0 %v883, 1
          %v908 = vpop.permute.xlu0 %907
          %s909 = sld [smem:[#allocation8 + $0x41]]
          %v910 = vstv %s909
          %v911 = vmul.f32 %v910, %v906
          %v912 = vmul.f32 %v910, %v908
          %v913 = vadd.f32 %v903, %v911
          %v914 = vadd.f32 %v904, %v912
          %s915 = sld [smem:[#allocation8 + $0x42]]
          %v916 = vstv %s915
          %v917 = vmul.f32 %v916, %v884
          %v918 = vmul.f32 %v916, %v883
          %v919 = vadd.f32 %v913, %v917
          %v920 = vadd.f32 %v914, %v918
          %921 = vrot.lane.b32.xlu0 %v884, 127
          %v922 = vpop.permute.xlu0 %921
          %923 = vrot.lane.b32.xlu0 %v883, 127
          %v924 = vpop.permute.xlu0 %923
          %s925 = sld [smem:[#allocation8 + $0x43]]
          %v926 = vstv %s925
          %v927 = vmul.f32 %v926, %v922
          %v928 = vmul.f32 %v926, %v924
          %v929 = vadd.f32 %v919, %v927
          %v930 = vadd.f32 %v920, %v928
          %931 = vrot.lane.b32.xlu0 %v884, 126
          %v932 = vpop.permute.xlu0 %931
          %933 = vrot.lane.b32.xlu0 %v883, 126
          %v934 = vpop.permute.xlu0 %933
          %s935 = sld [smem:[#allocation8 + $0x44]]
          %v936 = vstv %s935
          %v937 = vmul.f32 %v936, %v932
          %v938 = vmul.f32 %v936, %v934
          %v939 = vadd.f32 %v929, %v937
          %v940 = vadd.f32 %v930, %v938
          %941 = vrot.lane.b32.xlu0 %v884, 125
          %v942 = vpop.permute.xlu0 %941
          %943 = vrot.lane.b32.xlu0 %v883, 125
          %v944 = vpop.permute.xlu0 %943
          %s945 = sld [smem:[#allocation8 + $0x45]]
          %v946 = vstv %s945
          %v947 = vmul.f32 %v946, %v942
          %v948 = vmul.f32 %v946, %v944
          %v949 = vadd.f32 %v939, %v947
          %v950 = vadd.f32 %v940, %v948
          %951 = vrot.lane.b32.xlu0 %v253, 3
          %v952 = vpop.permute.xlu0 %951
          %953 = vrot.lane.b32.xlu0 %v254, 3
          %v954 = vpop.permute.xlu0 %953
          %s955 = sld [smem:[#allocation8 + $0x46]]
          %v956 = vstv %s955
          %v957 = vmul.f32 %v956, %v952
          %v958 = vmul.f32 %v956, %v954
          %v959 = vadd.f32 %v879, %v957
          %v960 = vadd.f32 %v880, %v958
          %961 = vrot.lane.b32.xlu0 %v253, 2
          %v962 = vpop.permute.xlu0 %961
          %963 = vrot.lane.b32.xlu0 %v254, 2
          %v964 = vpop.permute.xlu0 %963
          %s965 = sld [smem:[#allocation8 + $0x47]]
          %v966 = vstv %s965
          %v967 = vmul.f32 %v966, %v962
          %v968 = vmul.f32 %v966, %v964
          %v969 = vadd.f32 %v959, %v967
          %v970 = vadd.f32 %v960, %v968
          %971 = vrot.lane.b32.xlu0 %v253, 1
          %v972 = vpop.permute.xlu0 %971
          %973 = vrot.lane.b32.xlu0 %v254, 1
          %v974 = vpop.permute.xlu0 %973
          %s975 = sld [smem:[#allocation8 + $0x48]]
          %v976 = vstv %s975
          %v977 = vmul.f32 %v976, %v972
          %v978 = vmul.f32 %v976, %v974
          %v979 = vadd.f32 %v969, %v977
          %v980 = vadd.f32 %v970, %v978
          %s981 = sld [smem:[#allocation8 + $0x49]]
          %v982 = vstv %s981
          %v983 = vmul.f32 %v982, %v253
          %v984 = vmul.f32 %v982, %v254
          %v985 = vadd.f32 %v979, %v983
          %v986 = vadd.f32 %v980, %v984
          %987 = vrot.lane.b32.xlu0 %v253, 127
          %v988 = vpop.permute.xlu0 %987
          %989 = vrot.lane.b32.xlu0 %v254, 127
          %v990 = vpop.permute.xlu0 %989
          %s991 = sld [smem:[#allocation8 + $0x4a]]
          %v992 = vstv %s991
          %v993 = vmul.f32 %v992, %v988
          %v994 = vmul.f32 %v992, %v990
          %v995 = vadd.f32 %v985, %v993
          %v996 = vadd.f32 %v986, %v994
          %997 = vrot.lane.b32.xlu0 %v253, 126
          %v998 = vpop.permute.xlu0 %997
          %999 = vrot.lane.b32.xlu0 %v254, 126
          %v1000 = vpop.permute.xlu0 %999
          %s1001 = sld [smem:[#allocation8 + $0x4b]]
          %v1002 = vstv %s1001
          %v1003 = vmul.f32 %v1002, %v998
          %v1004 = vmul.f32 %v1002, %v1000
          %v1005 = vadd.f32 %v995, %v1003
          %v1006 = vadd.f32 %v996, %v1004
          %1007 = vrot.lane.b32.xlu0 %v253, 125
          %v1008 = vpop.permute.xlu0 %1007
          %1009 = vrot.lane.b32.xlu0 %v254, 125
          %v1010 = vpop.permute.xlu0 %1009
          %s1011 = sld [smem:[#allocation8 + $0x4c]]
          %v1012 = vstv %s1011
          %v1013 = vmul.f32 %v1012, %v1008
          %v1014 = vmul.f32 %v1012, %v1010
          %v1015 = vadd.f32 %v1005, %v1013
          %v1016 = vadd.f32 %v1006, %v1014
          %v1017 = vrot.slane %v253, 1
          %v1018 = vrot.slane %v254, 1
          %v1019 = vsel %vm534, %v1018, 0.0
          %v1020 = vsel %vm534, %v1017, %v1018
          %1021 = vrot.lane.b32.xlu0 %v1020, 3
          %v1022 = vpop.permute.xlu0 %1021
          %1023 = vrot.lane.b32.xlu0 %v1019, 3
          %v1024 = vpop.permute.xlu0 %1023
          %s1025 = sld [smem:[#allocation8 + $0x4d]]
          %v1026 = vstv %s1025
          %v1027 = vmul.f32 %v1026, %v1022
          %v1028 = vmul.f32 %v1026, %v1024
          %v1029 = vadd.f32 %v949, %v1027
          %v1030 = vadd.f32 %v950, %v1028
          %1031 = vrot.lane.b32.xlu0 %v1020, 2
          %v1032 = vpop.permute.xlu0 %1031
          %1033 = vrot.lane.b32.xlu0 %v1019, 2
          %v1034 = vpop.permute.xlu0 %1033
          %s1035 = sld [smem:[#allocation8 + $0x4e]]
          %v1036 = vstv %s1035
          %v1037 = vmul.f32 %v1036, %v1032
          %v1038 = vmul.f32 %v1036, %v1034
          %v1039 = vadd.f32 %v1029, %v1037
          %v1040 = vadd.f32 %v1030, %v1038
          %1041 = vrot.lane.b32.xlu0 %v1020, 1
          %v1042 = vpop.permute.xlu0 %1041
          %1043 = vrot.lane.b32.xlu0 %v1019, 1
          %v1044 = vpop.permute.xlu0 %1043
          %s1045 = sld [smem:[#allocation8 + $0x4f]]
          %v1046 = vstv %s1045
          %v1047 = vmul.f32 %v1046, %v1042
          %v1048 = vmul.f32 %v1046, %v1044
          %v1049 = vadd.f32 %v1039, %v1047
          %v1050 = vadd.f32 %v1040, %v1048
          %s1051 = sld [smem:[#allocation8 + $0x50]]
          %v1052 = vstv %s1051
          %v1053 = vmul.f32 %v1052, %v1020
          %v1054 = vmul.f32 %v1052, %v1019
          %v1055 = vadd.f32 %v1049, %v1053
          %v1056 = vadd.f32 %v1050, %v1054
          %1057 = vrot.lane.b32.xlu0 %v1020, 127
          %v1058 = vpop.permute.xlu0 %1057
          %1059 = vrot.lane.b32.xlu0 %v1019, 127
          %v1060 = vpop.permute.xlu0 %1059
          %s1061 = sld [smem:[#allocation8 + $0x51]]
          %v1062 = vstv %s1061
          %v1063 = vmul.f32 %v1062, %v1058
          %v1064 = vmul.f32 %v1062, %v1060
          %v1065 = vadd.f32 %v1055, %v1063
          %v1066 = vadd.f32 %v1056, %v1064
          %1067 = vrot.lane.b32.xlu0 %v1020, 126
          %v1068 = vpop.permute.xlu0 %1067
          %1069 = vrot.lane.b32.xlu0 %v1019, 126
          %v1070 = vpop.permute.xlu0 %1069
          %s1071 = sld [smem:[#allocation8 + $0x52]]
          %v1072 = vstv %s1071
          %v1073 = vmul.f32 %v1072, %v1068
          %v1074 = vmul.f32 %v1072, %v1070
          %v1075 = vadd.f32 %v1065, %v1073
          %v1076 = vadd.f32 %v1066, %v1074
          %1077 = vrot.lane.b32.xlu0 %v1020, 125
          %v1078 = vpop.permute.xlu0 %1077
          %1079 = vrot.lane.b32.xlu0 %v1019, 125
          %v1080 = vpop.permute.xlu0 %1079
          %s1081 = sld [smem:[#allocation8 + $0x53]]
          %v1082 = vstv %s1081
          %v1083 = vmul.f32 %v1082, %v1078
          %v1084 = vmul.f32 %v1082, %v1080
          %v1085 = vadd.f32 %v1075, %v1083
          %v1086 = vadd.f32 %v1076, %v1084
          %v1087 = vrot.slane %v253, 2
          %v1088 = vrot.slane %v254, 2
          %v1089 = vsel %vm605, %v1088, 0.0
          %v1090 = vsel %vm605, %v1087, %v1088
          %1091 = vrot.lane.b32.xlu0 %v1090, 3
          %v1092 = vpop.permute.xlu0 %1091
          %1093 = vrot.lane.b32.xlu0 %v1089, 3
          %v1094 = vpop.permute.xlu0 %1093
          %s1095 = sld [smem:[#allocation8 + $0x54]]
          %v1096 = vstv %s1095
          %v1097 = vmul.f32 %v1096, %v1092
          %v1098 = vmul.f32 %v1096, %v1094
          %v1099 = vadd.f32 %v1015, %v1097
          %v1100 = vadd.f32 %v1016, %v1098
          %1101 = vrot.lane.b32.xlu0 %v1090, 2
          %v1102 = vpop.permute.xlu0 %1101
          %1103 = vrot.lane.b32.xlu0 %v1089, 2
          %v1104 = vpop.permute.xlu0 %1103
          %s1105 = sld [smem:[#allocation8 + $0x55]]
          %v1106 = vstv %s1105
          %v1107 = vmul.f32 %v1106, %v1102
          %v1108 = vmul.f32 %v1106, %v1104
          %v1109 = vadd.f32 %v1099, %v1107
          %v1110 = vadd.f32 %v1100, %v1108
          %1111 = vrot.lane.b32.xlu0 %v1090, 1
          %v1112 = vpop.permute.xlu0 %1111
          %1113 = vrot.lane.b32.xlu0 %v1089, 1
          %v1114 = vpop.permute.xlu0 %1113
          %s1115 = sld [smem:[#allocation8 + $0x56]]
          %v1116 = vstv %s1115
          %v1117 = vmul.f32 %v1116, %v1112
          %v1118 = vmul.f32 %v1116, %v1114
          %v1119 = vadd.f32 %v1109, %v1117
          %v1120 = vadd.f32 %v1110, %v1118
          %s1121 = sld [smem:[#allocation8 + $0x57]]
          %v1122 = vstv %s1121
          %v1123 = vmul.f32 %v1122, %v1090
          %v1124 = vmul.f32 %v1122, %v1089
          %v1125 = vadd.f32 %v1119, %v1123
          %v1126 = vadd.f32 %v1120, %v1124
          %1127 = vrot.lane.b32.xlu0 %v1090, 127
          %v1128 = vpop.permute.xlu0 %1127
          %1129 = vrot.lane.b32.xlu0 %v1089, 127
          %v1130 = vpop.permute.xlu0 %1129
          %s1131 = sld [smem:[#allocation8 + $0x58]]
          %v1132 = vstv %s1131
          %v1133 = vmul.f32 %v1132, %v1128
          %v1134 = vmul.f32 %v1132, %v1130
          %v1135 = vadd.f32 %v1125, %v1133
          %v1136 = vadd.f32 %v1126, %v1134
          %1137 = vrot.lane.b32.xlu0 %v1090, 126
          %v1138 = vpop.permute.xlu0 %1137
          %1139 = vrot.lane.b32.xlu0 %v1089, 126
          %v1140 = vpop.permute.xlu0 %1139
          %s1141 = sld [smem:[#allocation8 + $0x59]]
          %v1142 = vstv %s1141
          %v1143 = vmul.f32 %v1142, %v1138
          %v1144 = vmul.f32 %v1142, %v1140
          %v1145 = vadd.f32 %v1135, %v1143
          %v1146 = vadd.f32 %v1136, %v1144
          %1147 = vrot.lane.b32.xlu0 %v1090, 125
          %v1148 = vpop.permute.xlu0 %1147
          %1149 = vrot.lane.b32.xlu0 %v1089, 125
          %v1150 = vpop.permute.xlu0 %1149
          %s1151 = sld [smem:[#allocation8 + $0x5a]]
          %v1152 = vstv %s1151
          %v1153 = vmul.f32 %v1152, %v1148
          %v1154 = vmul.f32 %v1152, %v1150
          %v1155 = vadd.f32 %v1145, %v1153
          %v1156 = vadd.f32 %v1146, %v1154
          %v1157 = vrot.slane %v253, 3
          %v1158 = vrot.slane %v254, 3
          %v1159 = vsel %vm676, %v1158, 0.0
          %v1160 = vsel %vm676, %v1157, %v1158
          %1161 = vrot.lane.b32.xlu0 %v1160, 3
          %v1162 = vpop.permute.xlu0 %1161
          %1163 = vrot.lane.b32.xlu0 %v1159, 3
          %v1164 = vpop.permute.xlu0 %1163
          %s1165 = sld [smem:[#allocation8 + $0x5b]]
          %v1166 = vstv %s1165
          %v1167 = vmul.f32 %v1166, %v1162
          %v1168 = vmul.f32 %v1166, %v1164
          %v1169 = vadd.f32 %v1085, %v1167
          %v1170 = vadd.f32 %v1086, %v1168
          %1171 = vrot.lane.b32.xlu0 %v1160, 2
          %v1172 = vpop.permute.xlu0 %1171
          %1173 = vrot.lane.b32.xlu0 %v1159, 2
          %v1174 = vpop.permute.xlu0 %1173
          %s1175 = sld [smem:[#allocation8 + $0x5c]]
          %v1176 = vstv %s1175
          %v1177 = vmul.f32 %v1176, %v1172
          %v1178 = vmul.f32 %v1176, %v1174
          %v1179 = vadd.f32 %v1169, %v1177
          %v1180 = vadd.f32 %v1170, %v1178
          %1181 = vrot.lane.b32.xlu0 %v1160, 1
          %v1182 = vpop.permute.xlu0 %1181
          %1183 = vrot.lane.b32.xlu0 %v1159, 1
          %v1184 = vpop.permute.xlu0 %1183
          %s1185 = sld [smem:[#allocation8 + $0x5d]]
          %v1186 = vstv %s1185
          %v1187 = vmul.f32 %v1186, %v1182
          %v1188 = vmul.f32 %v1186, %v1184
          %v1189 = vadd.f32 %v1179, %v1187
          %v1190 = vadd.f32 %v1180, %v1188
          %s1191 = sld [smem:[#allocation8 + $0x5e]]
          %v1192 = vstv %s1191
          %v1193 = vmul.f32 %v1192, %v1160
          %v1194 = vmul.f32 %v1192, %v1159
          %v1195 = vadd.f32 %v1189, %v1193
          %v1196 = vadd.f32 %v1190, %v1194
          %1197 = vrot.lane.b32.xlu0 %v1160, 127
          %v1198 = vpop.permute.xlu0 %1197
          %1199 = vrot.lane.b32.xlu0 %v1159, 127
          %v1200 = vpop.permute.xlu0 %1199
          %s1201 = sld [smem:[#allocation8 + $0x5f]]
          %v1202 = vstv %s1201
          %v1203 = vmul.f32 %v1202, %v1198
          %v1204 = vmul.f32 %v1202, %v1200
          %v1205 = vadd.f32 %v1195, %v1203
          %v1206 = vadd.f32 %v1196, %v1204
          %1207 = vrot.lane.b32.xlu0 %v1160, 126
          %v1208 = vpop.permute.xlu0 %1207
          %1209 = vrot.lane.b32.xlu0 %v1159, 126
          %v1210 = vpop.permute.xlu0 %1209
          %s1211 = sld [smem:[#allocation8 + $0x60]]
          %v1212 = vstv %s1211
          %v1213 = vmul.f32 %v1212, %v1208
          %v1214 = vmul.f32 %v1212, %v1210
          %v1215 = vadd.f32 %v1205, %v1213
          %v1216 = vadd.f32 %v1206, %v1214
          %1217 = vrot.lane.b32.xlu0 %v1160, 125
          %v1218 = vpop.permute.xlu0 %1217
          %1219 = vrot.lane.b32.xlu0 %v1159, 125
          %v1220 = vpop.permute.xlu0 %1219
          %s1221 = sld [smem:[#allocation8 + $0x61]]
          %v1222 = vstv %s1221
          %v1223 = vmul.f32 %v1222, %v1218
          %v1224 = vmul.f32 %v1222, %v1220
          %v1225 = vadd.f32 %v1215, %v1223
          %v1226 = vadd.f32 %v1216, %v1224
          %v1227 = vadd.f32 %v743, %v672
          %v1228 = vadd.f32 %v744, %v673
          %v1229 = vadd.f32 %v1225, %v1155
          %v1230 = vadd.f32 %v1226, %v1156
          %v1231 = vadd.f32 %v1227, %v1229
          %v1232 = vadd.f32 %v1228, %v1230
          %v1233 = vxor.u32 %v1231, 2147483648
          %v1234 = vxor.u32 %v1232, 2147483648
          %v1235 = vmul.f32 %v1233, 1.442695
          %v1236 = vpow.pop %v1235
          %v1237 = vmul.f32 %v1234, 1.442695
          %v1238 = vpow.pop %v1237
          %v1239 = vadd.f32 %v1236, 1.0
          %v1240 = vadd.f32 %v1238, 1.0
          %v1241 = vrcp.pop %v1239
          %v1242 = vmul.f32 1.0, %v1241
          %v1243 = vrcp.pop %v1240
          %v1244 = vmul.f32 1.0, %v1243
          %1245 = vst.msk [vmem:[%s192] sm:$0xff] %vm248, %v1242
          %1246 = vst.msk [vmem:[%s192 + $0x8] sm:$0xff] %vm248, %v1244
        $region48: #{tpu_custom_call.1} parent=27 // pred_fallthru
          _
        %s1247 = sand.u32 %s89, 1
        %s1248 = scalar_lea.sflag [#allocation6], %s1247
        %s1249 = sand.u32 %s89, 1
        %s1250 = smul.addr %s1249, 16
        %s1251 = scalar_lea.vmem [#allocation9], %s1250
        // Predicated region
        $region49: #{tpu_custom_call.1} parent=27 // pred_check
          %p1252 = pneg %p99
        $region50: #{tpu_custom_call.1} parent=27 // pred_check_branch
          %1254 = sbr.rel (%p1252) target = $region52
        $region51: #{tpu_custom_call.1} parent=27 // pred_region
          %s1256 = ssub.s32 256, 256
          %1257 = vsyncadd %s1248, %s1256
          %s1258 = smul.addr %s24, 2
          %s1259 = smul.addr %s1258, 128
          %s1260 = scalar_lea.hbm %s2, %s1259
          %s1261 = sshll.u32 %s1251, 4
          %s1262 = int_to_ptr.vmem [resolvable:$true] %s1261
          %1267 = dma.vmem_to_hbm [thread:$0]  %s1262, 256, %s1260, %s1248, 128, 128, 8
        $region52: #{tpu_custom_call.1} parent=27 // pred_fallthru
          _
      $region28: #{tpu_custom_call.1} parent=5 // pred_fallthru
        _
      %p1268 = scmp.le.s32.totalorder 2, %s15
      // Predicated region
      $region53: #{tpu_custom_call.1} parent=5 // pred_check
        %p1269 = pneg %p1268
      $region54: #{tpu_custom_call.1} parent=5 // pred_check_branch
        %1271 = sbr.rel (%p1269) target = $region56
      $region55: #{tpu_custom_call.1} parent=5 // pred_region
        %s1272 = ssub.s32 %s15, 2
        // Predicated region
        $region57: #{tpu_custom_call.1} parent=55 // pred_check
          %p1273 = pneg %p105
        $region58: #{tpu_custom_call.1} parent=55 // pred_check_branch
          %1275 = sbr.rel (%p1273) target = $region60
        $region59: #{tpu_custom_call.1} parent=55 // pred_region
          %s1276 = sand.u32 %s90, 1
          %s1277 = scalar_lea.sflag [#allocation6], %s1276
          %s1278 = sand.u32 %s90, 1
          %s1279 = smul.addr %s1278, 16
          %s1280 = scalar_lea.vmem [#allocation9], %s1279
          %1281 = dma.done %s1277, 256
        $region60: #{tpu_custom_call.1} parent=55 // pred_fallthru
          _
      $region56: #{tpu_custom_call.1} parent=5 // pred_fallthru
        _
    $region6: #{tpu_custom_call.1} parent=1 // loop_footer
      %s19 = sadd.s32 1, %s15
    $region7: #{tpu_custom_call.1} parent=1 // loop_footer_branch
      %14 = sbr.rel target = $region3
    $region8: #{tpu_custom_call.1} parent=1 // loop_exit
      _
    %1282 = vsyncpa [#allocation5], 1
    %s1283 = scalar_lea.sflag [#allocation5], 1
    %1284 = vsyncpa %s1283, 1
    %1285 = vsyncpa [#allocation6], 1
    %s1286 = scalar_lea.sflag [#allocation6], 1
    %1287 = vsyncpa %s1286, 1
    %1288 = vsyncpa [#allocation7], 1
    %s1289 = scalar_lea.sflag [#allocation7], 1
    %1290 = vsyncpa %s1289, 1

</llo_original>
